<compile_context>
chip_gen: v7x
topology: tpu7x:2x2x1
jax: 0.10.0
libtpu: 0.0.40
codegen_flags: <defaults>
</compile_context>

<pallas_src>
import math

import numpy as np
import jax
import jax.numpy as jnp
from jax.experimental import pallas as pl
from jax.experimental.pallas import tpu as pltpu

R_EARTH = 6378137.0
RAD2DEG = 180.0 / math.pi

# packed-plane indices (channels-first, sublane+lane dense)
_PL_XP, _PL_YP, _PL_HP, _PL_CONF = 0, 1, 2, 3
_PL_LGT, _PL_SGT = 4, 5
_PL_XG, _PL_YG, _PL_HG = 6, 7, 8
_PL_P, _PL_L, _PL_H = 9, 10, 11
_N_PLANES = 12


def criterion_kernel(scal_ref, data_ref, out_ref):
    """scal_ref: SMEM f32[91]        = [progress, rpc_params(90)]
       data_ref: VMEM f32[12, 8, N/8] packed per-point planes
       out_ref : SMEM f32[6]         = [loss, loss_obj, loss_height,
                                        loss_photo, loss_bias, loss_reg]"""
    n_pts = data_ref.shape[1] * data_ref.shape[2]
    n_f = float(n_pts)
    inv_n = 1.0 / n_f                         # compile-time constants (n static)
    inv_nm1 = 1.0 / max(n_f - 1.0, 1.0)       # torch.std is unbiased; guard n==1

    prog = scal_ref[0]

    def rc(i):  # RPC parameter i (SMEM scalar read)
        return scal_ref[1 + i]

    def tsum(v):
        # (8, N/8) -> (1, 1) total: lane reduce then sublane reduce, result kept
        # in the vector domain (no sreg round trip).
        return jnp.sum(jnp.sum(v, axis=1, keepdims=True), axis=0, keepdims=True)

    # ---- RPC rational cubic projection --------------------------------------
    # Interleaved accumulation: each monomial is built once and folded into all
    # four polynomial accumulators right away, keeping the live vreg set small.
    P = data_ref[_PL_P]
    L = data_ref[_PL_L]
    H = data_ref[_PL_H]

    PL = P * L
    PH = P * H
    LH = L * H
    PP = P * P
    LL = L * L
    HH = H * H

    bases = (10, 30, 50, 70)  # LINE_NUM, LINE_DEN, SAMP_NUM, SAMP_DEN offsets
    acc = [rc(b) + L * rc(b + 1) for b in bases]      # terms 0 (const) and 1 (L)

    def fma_all(acc, k, term):
        return [a + term * rc(b + k) for a, b in zip(acc, bases)]

    # linear / quadratic terms (base products reused)
    for k, term in ((2, P), (3, H), (4, PL), (5, LH), (6, PH),
                    (7, LL), (8, PP), (9, HH)):
        acc = fma_all(acc, k, term)
    # cubic terms: built and consumed one at a time (never all live at once)
    acc = fma_all(acc, 10, PL * H)
    acc = fma_all(acc, 11, LL * L)
    acc = fma_all(acc, 12, L * PP)
    acc = fma_all(acc, 13, L * HH)
    acc = fma_all(acc, 14, LL * P)
    acc = fma_all(acc, 15, PP * P)
    acc = fma_all(acc, 16, P * HH)
    acc = fma_all(acc, 17, LL * H)
    acc = fma_all(acc, 18, PP * H)
    acc = fma_all(acc, 19, HH * H)
    line_num, line_den, samp_num, samp_den = acc

    # exact f32 division for the rational denominators (precision feeds pixel
    # space); scale/offset are (line_off, line_scale, samp_off, samp_scale).
    line = line_num / line_den * rc(7) + rc(6)
    samp = samp_num / samp_den * rc(9) + rc(8)

    # ---- remaining planes (loaded after the RPC section; VMEM stays resident)
    x_pred = data_ref[_PL_XP]
    y_pred = data_ref[_PL_YP]
    h_pred = data_ref[_PL_HP]
    conf0 = data_ref[_PL_CONF]
    line_gt = data_ref[_PL_LGT]
    samp_gt = data_ref[_PL_SGT]
    x_gt = data_ref[_PL_XG]
    y_gt = data_ref[_PL_YG]
    h_gt = data_ref[_PL_HG]

    # ---- confidence re-weighting (progress dependent) ----
    hi = 0.5 + prog * 0.4
    lo = 0.5 - prog * 0.4
    conf1 = jnp.where(conf0 > 0.5, hi, jnp.where(conf0 < 0.5, lo, conf0))

    bias0 = line - line_gt
    bias1 = samp - samp_gt

    d_obj = jnp.sqrt((x_pred - x_gt) ** 2 + (y_pred - y_gt) ** 2)
    d_h = jnp.abs(h_pred - h_gt)
    d_photo = jnp.sqrt(bias0 * bias0 + bias1 * bias1)

    # ---- reduction round 1: conf mean + mean-shift (kept as (1,1) vectors) ----
    conf_mean = tsum(conf1) * inv_n
    ms0 = (tsum(line) - tsum(line_gt)) * inv_n    # mean(pred_line) - mean(gt_line)
    ms1 = (tsum(samp) - tsum(samp_gt)) * inv_n    # mean(pred_samp) - mean(gt_samp)

    conf = jnp.maximum(conf1 - conf_mean + 1.0, 0.0)
    dv0 = line_gt + ms0 - line
    dv1 = samp_gt + ms1 - samp
    dis = jnp.sqrt(dv0 * dv0 + dv1 * dv1)

    # ---- round 2: conf-weighted loss sums + dis statistics ----
    loss_obj = tsum(d_obj * conf) * inv_n
    loss_height = tsum(d_h * conf) * inv_n
    loss_photo = tsum(d_photo * conf) * inv_n
    mb0 = tsum(bias0 * conf) * inv_n
    mb1 = tsum(bias1 * conf) * inv_n
    loss_bias = jnp.sqrt(mb0 * mb0 + mb1 * mb1)
    dis_mean = tsum(dis) * inv_n
    # dv0/dv1 are mean-centred, so dis carries no large common offset and the
    # single-pass variance formula is numerically benign in f32 (clamped >= 0).
    dis_var = (tsum(dis * dis) - n_f * dis_mean * dis_mean) * inv_nm1
    dis_std = jnp.sqrt(jnp.maximum(dis_var, 0.0))

    # torch boolean row selection as 0/1 weights (threshold on the shifted conf,
    # exactly as the torch code does)
    w = ((conf > 0.5) & (dis < dis_mean + dis_std)).astype(jnp.float32)

    # ---- round 3a: weighted first moments (centering) ----
    m = tsum(w)
    inv_m = 1.0 / jnp.maximum(m, 1.0)    # guard: degenerate mask (m < 1)
    cx0 = tsum(w * line_gt) * inv_m
    cx1 = tsum(w * samp_gt) * inv_m
    cp0 = tsum(w * line) * inv_m
    cp1 = tsum(w * samp) * inv_m

    x0c = line_gt - cx0
    x1c = samp_gt - cx1
    p0c = line - cp0
    p1c = samp - cp1

    # ---- round 3b: centered second moments -> weighted 2x2 normal equations
    #      (mathematically identical to the torch 3x3 X^T X solve, better fp32) ----
    wx0 = w * x0c
    wx1 = w * x1c
    s00 = tsum(wx0 * x0c)
    s01 = tsum(wx0 * x1c)
    s11 = tsum(wx1 * x1c)
    c00 = tsum(wx0 * p0c)
    c01 = tsum(wx0 * p1c)
    c10 = tsum(wx1 * p0c)
    c11 = tsum(wx1 * p1c)

    det = s00 * s11 - s01 * s01
    # guard: collinear / too-few selected points would make the torch inverse
    # blow up (NaN); keep the result finite instead.
    det_safe = jnp.where(det > 0.0, det, jnp.float32(1.0))
    inv_det = 1.0 / det_safe
    t00 = (s11 * c00 - s01 * c10) * inv_det
    t10 = (s00 * c10 - s01 * c00) * inv_det
    t01 = (s11 * c01 - s01 * c11) * inv_det
    t11 = (s00 * c11 - s01 * c01) * inv_det

    # regressed GT points; residual is measured against the GT (torch: reg - local)
    reg0 = x0c * t00 + x1c * t10 + cp0
    reg1 = x0c * t01 + x1c * t11 + cp1
    rnorm = jnp.sqrt((reg0 - line_gt) ** 2 + (reg1 - samp_gt) ** 2)

    # ---- round 4: final weighted regression residual ----
    loss_reg = tsum(w * rnorm) * inv_m

    loss = loss_obj + loss_height * 10.0 + loss_photo + loss_bias + loss_reg

    # scalar extracts only here, at the very end (SMEM outputs)
    out_ref[0] = loss[0, 0]
    out_ref[1] = loss_obj[0, 0]
    out_ref[2] = loss_height[0, 0]
    out_ref[3] = loss_photo[0, 0]
    out_ref[4] = loss_bias[0, 0]
    out_ref[5] = loss_reg[0, 0]


# ----------------------------------------------------------------------------
# wrapper: fused host pre-pass (arctan + RPC normalization), sublane-dense
# packing, single pallas_call with one SMEM scalar input and one VMEM data
# input.  allow_input_fusion lets XLA fuse the pre-pass/pack into the operand.
# ----------------------------------------------------------------------------
@jax.jit
def criterion_train_grid(epoch, max_epoch, xyh_pred, conf, linesamp_gt, xyh_gt, rpc_params):
    n = xyh_pred.shape[0]
    assert n % 8 == 0, "point count must be a multiple of 8"  # TODO(synk): pad+mask for ragged N
    nl = n // 8

    xyh_pred = xyh_pred.astype(jnp.float32)
    conf = conf.astype(jnp.float32).reshape(n)
    linesamp_gt = linesamp_gt.astype(jnp.float32)
    xyh_gt = xyh_gt.astype(jnp.float32)
    rpc_params = rpc_params.astype(jnp.float32)

    progress = jnp.asarray(epoch, jnp.float32) / jnp.asarray(max_epoch, jnp.float32)

    # inverse web-mercator (= mercator2lonlat(xy_pred[:, [1, 0]]) with plain
    # column slices): lat from northing (y), lon from easting (x).
    northing = xyh_pred[:, 1]
    easting = xyh_pred[:, 0]
    lat = (2.0 * jnp.arctan(jnp.exp(northing / R_EARTH)) - math.pi / 2.0) * RAD2DEG
    lon = easting / R_EARTH * RAD2DEG

    # RPC lat/lon/height normalization folded into the same fused pre-pass
    P = (lat - rpc_params[0]) / rpc_params[1]
    L = (lon - rpc_params[2]) / rpc_params[3]
    H = (xyh_pred[:, 2] - rpc_params[4]) / rpc_params[5]

    def plane(v):  # (N,) -> (8, N/8): sublane+lane dense tile per quantity
        return v.reshape(8, nl)

    packed = jnp.stack(
        [plane(xyh_pred[:, 0]), plane(xyh_pred[:, 1]), plane(xyh_pred[:, 2]),
         plane(conf),
         plane(linesamp_gt[:, 0]), plane(linesamp_gt[:, 1]),
         plane(xyh_gt[:, 0]), plane(xyh_gt[:, 1]), plane(xyh_gt[:, 2]),
         plane(P), plane(L), plane(H)], axis=0)            # (12, 8, N/8)

    scalars = jnp.concatenate([progress[None], rpc_params])  # (91,)

    out = pl.pallas_call(
        criterion_kernel,
        out_shape=jax.ShapeDtypeStruct((6,), jnp.float32),
        in_specs=[
            pl.BlockSpec(memory_space=pltpu.MemorySpace.SMEM),   # scalars (91,)
            pl.BlockSpec(memory_space=pltpu.MemorySpace.VMEM),   # packed (12,8,N/8)
        ],
        out_specs=pl.BlockSpec(memory_space=pltpu.MemorySpace.SMEM),
        compiler_params=pltpu.CompilerParams(
            allow_input_fusion=[False, True]),
    )(scalars, packed)

    return out[0], out[1], out[2], out[3], out[4], out[5]


def make_rpc_params(lat0, lon0, h0):
    """Deterministic synthetic RPCModelParameter:
    [lat_off, lat_scale, lon_off, lon_scale, hei_off, hei_scale,
     line_off, line_scale, samp_off, samp_scale,
     LINE_NUM(20), LINE_DEN(20), SAMP_NUM(20), SAMP_DEN(20)]  -> (90,)"""
    lnum = np.zeros(20); lden = np.zeros(20)
    snum = np.zeros(20); sden = np.zeros(20)
    lnum[0] = 0.002;  lnum[2] = -0.98; lnum[3] = 0.015; lnum[7] = 1e-4; lnum[8] = 2e-4
    lden[0] = 1.0;    lden[1] = 1e-4;  lden[2] = -2e-4; lden[3] = 5e-5
    snum[0] = -0.001; snum[1] = 1.01;  snum[3] = 0.02;  snum[4] = 3e-4; snum[9] = 1e-4
    sden[0] = 1.0;    sden[1] = -1e-4; sden[2] = 2e-4;  sden[3] = 8e-5
    head = np.array([lat0, 0.05, lon0, 0.05, h0, 500.0,
                     512.0, 512.0, 512.0, 512.0], dtype=np.float64)
    return jnp.asarray(np.concatenate([head, lnum, lden, snum, sden]), dtype=jnp.float32)


if __name__ == "__main__":
    N = 256
    key = jax.random.PRNGKey(0)
    k1, k2, k3, k4, k5, k6 = jax.random.split(key, 6)

    # scene center in web-mercator meters
    xc, yc, h0 = 1.0e6, 4.0e6, 100.0
    lon0 = xc / R_EARTH * RAD2DEG
    lat0 = (2.0 * math.atan(math.exp(yc / R_EARTH)) - math.pi / 2.0) * RAD2DEG

    xy_pred = jnp.stack(
        [xc + jax.random.uniform(k1, (N,), minval=-300.0, maxval=300.0),
         yc + jax.random.uniform(k2, (N,), minval=-300.0, maxval=300.0)], axis=1)
    h_pred = h0 + jax.random.uniform(k3, (N,), minval=-50.0, maxval=50.0)
    xyh_pred = jnp.concatenate([xy_pred, h_pred[:, None]], axis=1)

    xyh_gt = xyh_pred + jax.random.normal(k4, (N, 3)) * jnp.asarray([5.0, 5.0, 2.0])
    conf = jax.random.uniform(k5, (N,), minval=0.0, maxval=1.0)
    linesamp_gt = jax.random.uniform(k6, (N, 2), minval=0.0, maxval=1024.0)

    rpc_params = make_rpc_params(lat0, lon0, h0)

    epoch, max_epoch = 3, 10
    outs = criterion_train_grid(epoch, max_epoch, xyh_pred, conf,
                                linesamp_gt, xyh_gt, rpc_params)
    outs = jax.block_until_ready(outs)

    names = ["loss", "loss_obj", "loss_height", "loss_photo", "loss_bias", "loss_reg"]
    assert all(bool(jnp.isfinite(o)) for o in outs), "non-finite loss output"
    for nme, o in zip(names, outs):
        print(f"  {nme}: {float(o):.6f}")
    print("KERNEL_OK")
</pallas_src>

<mosaic_0001>
module attributes {stable_mosaic.version = 11 : i64} {
  func.func @criterion_kernel(%arg0: memref<91xf32, #tpu.memory_space<smem>>, %arg1: memref<12x8x32xf32, #tpu.memory_space<vmem>>, %arg2: memref<6xf32, #tpu.memory_space<smem>>) attributes {dimension_semantics = [], scalar_prefetch = 0 : i64, scratch_operands = 0 : i64, tpu.core_type = #tpu.core_type<tc>} {
    %c0 = arith.constant 0 : index
    %0 = memref.load %arg0[%c0] : memref<91xf32, #tpu.memory_space<smem>>
    %c9 = arith.constant 9 : index
    %c0_0 = arith.constant 0 : index
    %c0_1 = arith.constant 0 : index
    %1 = vector.load %arg1[%c9, %c0_0, %c0_1] : memref<12x8x32xf32, #tpu.memory_space<vmem>>, vector<1x8x32xf32>
    %2 = vector.shape_cast %1 : vector<1x8x32xf32> to vector<8x32xf32>
    %c10 = arith.constant 10 : index
    %c0_2 = arith.constant 0 : index
    %c0_3 = arith.constant 0 : index
    %3 = vector.load %arg1[%c10, %c0_2, %c0_3] : memref<12x8x32xf32, #tpu.memory_space<vmem>>, vector<1x8x32xf32>
    %4 = vector.shape_cast %3 : vector<1x8x32xf32> to vector<8x32xf32>
    %c11 = arith.constant 11 : index
    %c0_4 = arith.constant 0 : index
    %c0_5 = arith.constant 0 : index
    %5 = vector.load %arg1[%c11, %c0_4, %c0_5] : memref<12x8x32xf32, #tpu.memory_space<vmem>>, vector<1x8x32xf32>
    %6 = vector.shape_cast %5 : vector<1x8x32xf32> to vector<8x32xf32>
    %7 = arith.mulf %2, %4 : vector<8x32xf32>
    %8 = arith.mulf %2, %6 : vector<8x32xf32>
    %9 = arith.mulf %4, %6 : vector<8x32xf32>
    %10 = arith.mulf %2, %2 : vector<8x32xf32>
    %11 = arith.mulf %4, %4 : vector<8x32xf32>
    %12 = arith.mulf %6, %6 : vector<8x32xf32>
    %c11_6 = arith.constant 11 : index
    %13 = memref.load %arg0[%c11_6] : memref<91xf32, #tpu.memory_space<smem>>
    %c12 = arith.constant 12 : index
    %14 = memref.load %arg0[%c12] : memref<91xf32, #tpu.memory_space<smem>>
    %15 = vector.broadcast %14 : f32 to vector<8x32xf32>
    %16 = arith.mulf %4, %15 : vector<8x32xf32>
    %17 = vector.broadcast %13 : f32 to vector<8x32xf32>
    %18 = arith.addf %17, %16 : vector<8x32xf32>
    %c31 = arith.constant 31 : index
    %19 = memref.load %arg0[%c31] : memref<91xf32, #tpu.memory_space<smem>>
    %c32 = arith.constant 32 : index
    %20 = memref.load %arg0[%c32] : memref<91xf32, #tpu.memory_space<smem>>
    %21 = vector.broadcast %20 : f32 to vector<8x32xf32>
    %22 = arith.mulf %4, %21 : vector<8x32xf32>
    %23 = vector.broadcast %19 : f32 to vector<8x32xf32>
    %24 = arith.addf %23, %22 : vector<8x32xf32>
    %c51 = arith.constant 51 : index
    %25 = memref.load %arg0[%c51] : memref<91xf32, #tpu.memory_space<smem>>
    %c52 = arith.constant 52 : index
    %26 = memref.load %arg0[%c52] : memref<91xf32, #tpu.memory_space<smem>>
    %27 = vector.broadcast %26 : f32 to vector<8x32xf32>
    %28 = arith.mulf %4, %27 : vector<8x32xf32>
    %29 = vector.broadcast %25 : f32 to vector<8x32xf32>
    %30 = arith.addf %29, %28 : vector<8x32xf32>
    %c71 = arith.constant 71 : index
    %31 = memref.load %arg0[%c71] : memref<91xf32, #tpu.memory_space<smem>>
    %c72 = arith.constant 72 : index
    %32 = memref.load %arg0[%c72] : memref<91xf32, #tpu.memory_space<smem>>
    %33 = vector.broadcast %32 : f32 to vector<8x32xf32>
    %34 = arith.mulf %4, %33 : vector<8x32xf32>
    %35 = vector.broadcast %31 : f32 to vector<8x32xf32>
    %36 = arith.addf %35, %34 : vector<8x32xf32>
    %c13 = arith.constant 13 : index
    %37 = memref.load %arg0[%c13] : memref<91xf32, #tpu.memory_space<smem>>
    %38 = vector.broadcast %37 : f32 to vector<8x32xf32>
    %39 = arith.mulf %2, %38 : vector<8x32xf32>
    %40 = arith.addf %18, %39 : vector<8x32xf32>
    %c33 = arith.constant 33 : index
    %41 = memref.load %arg0[%c33] : memref<91xf32, #tpu.memory_space<smem>>
    %42 = vector.broadcast %41 : f32 to vector<8x32xf32>
    %43 = arith.mulf %2, %42 : vector<8x32xf32>
    %44 = arith.addf %24, %43 : vector<8x32xf32>
    %c53 = arith.constant 53 : index
    %45 = memref.load %arg0[%c53] : memref<91xf32, #tpu.memory_space<smem>>
    %46 = vector.broadcast %45 : f32 to vector<8x32xf32>
    %47 = arith.mulf %2, %46 : vector<8x32xf32>
    %48 = arith.addf %30, %47 : vector<8x32xf32>
    %c73 = arith.constant 73 : index
    %49 = memref.load %arg0[%c73] : memref<91xf32, #tpu.memory_space<smem>>
    %50 = vector.broadcast %49 : f32 to vector<8x32xf32>
    %51 = arith.mulf %2, %50 : vector<8x32xf32>
    %52 = arith.addf %36, %51 : vector<8x32xf32>
    %c14 = arith.constant 14 : index
    %53 = memref.load %arg0[%c14] : memref<91xf32, #tpu.memory_space<smem>>
    %54 = vector.broadcast %53 : f32 to vector<8x32xf32>
    %55 = arith.mulf %6, %54 : vector<8x32xf32>
    %56 = arith.addf %40, %55 : vector<8x32xf32>
    %c34 = arith.constant 34 : index
    %57 = memref.load %arg0[%c34] : memref<91xf32, #tpu.memory_space<smem>>
    %58 = vector.broadcast %57 : f32 to vector<8x32xf32>
    %59 = arith.mulf %6, %58 : vector<8x32xf32>
    %60 = arith.addf %44, %59 : vector<8x32xf32>
    %c54 = arith.constant 54 : index
    %61 = memref.load %arg0[%c54] : memref<91xf32, #tpu.memory_space<smem>>
    %62 = vector.broadcast %61 : f32 to vector<8x32xf32>
    %63 = arith.mulf %6, %62 : vector<8x32xf32>
    %64 = arith.addf %48, %63 : vector<8x32xf32>
    %c74 = arith.constant 74 : index
    %65 = memref.load %arg0[%c74] : memref<91xf32, #tpu.memory_space<smem>>
    %66 = vector.broadcast %65 : f32 to vector<8x32xf32>
    %67 = arith.mulf %6, %66 : vector<8x32xf32>
    %68 = arith.addf %52, %67 : vector<8x32xf32>
    %c15 = arith.constant 15 : index
    %69 = memref.load %arg0[%c15] : memref<91xf32, #tpu.memory_space<smem>>
    %70 = vector.broadcast %69 : f32 to vector<8x32xf32>
    %71 = arith.mulf %7, %70 : vector<8x32xf32>
    %72 = arith.addf %56, %71 : vector<8x32xf32>
    %c35 = arith.constant 35 : index
    %73 = memref.load %arg0[%c35] : memref<91xf32, #tpu.memory_space<smem>>
    %74 = vector.broadcast %73 : f32 to vector<8x32xf32>
    %75 = arith.mulf %7, %74 : vector<8x32xf32>
    %76 = arith.addf %60, %75 : vector<8x32xf32>
    %c55 = arith.constant 55 : index
    %77 = memref.load %arg0[%c55] : memref<91xf32, #tpu.memory_space<smem>>
    %78 = vector.broadcast %77 : f32 to vector<8x32xf32>
    %79 = arith.mulf %7, %78 : vector<8x32xf32>
    %80 = arith.addf %64, %79 : vector<8x32xf32>
    %c75 = arith.constant 75 : index
    %81 = memref.load %arg0[%c75] : memref<91xf32, #tpu.memory_space<smem>>
    %82 = vector.broadcast %81 : f32 to vector<8x32xf32>
    %83 = arith.mulf %7, %82 : vector<8x32xf32>
    %84 = arith.addf %68, %83 : vector<8x32xf32>
    %c16 = arith.constant 16 : index
    %85 = memref.load %arg0[%c16] : memref<91xf32, #tpu.memory_space<smem>>
    %86 = vector.broadcast %85 : f32 to vector<8x32xf32>
    %87 = arith.mulf %9, %86 : vector<8x32xf32>
    %88 = arith.addf %72, %87 : vector<8x32xf32>
    %c36 = arith.constant 36 : index
    %89 = memref.load %arg0[%c36] : memref<91xf32, #tpu.memory_space<smem>>
    %90 = vector.broadcast %89 : f32 to vector<8x32xf32>
    %91 = arith.mulf %9, %90 : vector<8x32xf32>
    %92 = arith.addf %76, %91 : vector<8x32xf32>
    %c56 = arith.constant 56 : index
    %93 = memref.load %arg0[%c56] : memref<91xf32, #tpu.memory_space<smem>>
    %94 = vector.broadcast %93 : f32 to vector<8x32xf32>
    %95 = arith.mulf %9, %94 : vector<8x32xf32>
    %96 = arith.addf %80, %95 : vector<8x32xf32>
    %c76 = arith.constant 76 : index
    %97 = memref.load %arg0[%c76] : memref<91xf32, #tpu.memory_space<smem>>
    %98 = vector.broadcast %97 : f32 to vector<8x32xf32>
    %99 = arith.mulf %9, %98 : vector<8x32xf32>
    %100 = arith.addf %84, %99 : vector<8x32xf32>
    %c17 = arith.constant 17 : index
    %101 = memref.load %arg0[%c17] : memref<91xf32, #tpu.memory_space<smem>>
    %102 = vector.broadcast %101 : f32 to vector<8x32xf32>
    %103 = arith.mulf %8, %102 : vector<8x32xf32>
    %104 = arith.addf %88, %103 : vector<8x32xf32>
    %c37 = arith.constant 37 : index
    %105 = memref.load %arg0[%c37] : memref<91xf32, #tpu.memory_space<smem>>
    %106 = vector.broadcast %105 : f32 to vector<8x32xf32>
    %107 = arith.mulf %8, %106 : vector<8x32xf32>
    %108 = arith.addf %92, %107 : vector<8x32xf32>
    %c57 = arith.constant 57 : index
    %109 = memref.load %arg0[%c57] : memref<91xf32, #tpu.memory_space<smem>>
    %110 = vector.broadcast %109 : f32 to vector<8x32xf32>
    %111 = arith.mulf %8, %110 : vector<8x32xf32>
    %112 = arith.addf %96, %111 : vector<8x32xf32>
    %c77 = arith.constant 77 : index
    %113 = memref.load %arg0[%c77] : memref<91xf32, #tpu.memory_space<smem>>
    %114 = vector.broadcast %113 : f32 to vector<8x32xf32>
    %115 = arith.mulf %8, %114 : vector<8x32xf32>
    %116 = arith.addf %100, %115 : vector<8x32xf32>
    %c18 = arith.constant 18 : index
    %117 = memref.load %arg0[%c18] : memref<91xf32, #tpu.memory_space<smem>>
    %118 = vector.broadcast %117 : f32 to vector<8x32xf32>
    %119 = arith.mulf %11, %118 : vector<8x32xf32>
    %120 = arith.addf %104, %119 : vector<8x32xf32>
    %c38 = arith.constant 38 : index
    %121 = memref.load %arg0[%c38] : memref<91xf32, #tpu.memory_space<smem>>
    %122 = vector.broadcast %121 : f32 to vector<8x32xf32>
    %123 = arith.mulf %11, %122 : vector<8x32xf32>
    %124 = arith.addf %108, %123 : vector<8x32xf32>
    %c58 = arith.constant 58 : index
    %125 = memref.load %arg0[%c58] : memref<91xf32, #tpu.memory_space<smem>>
    %126 = vector.broadcast %125 : f32 to vector<8x32xf32>
    %127 = arith.mulf %11, %126 : vector<8x32xf32>
    %128 = arith.addf %112, %127 : vector<8x32xf32>
    %c78 = arith.constant 78 : index
    %129 = memref.load %arg0[%c78] : memref<91xf32, #tpu.memory_space<smem>>
    %130 = vector.broadcast %129 : f32 to vector<8x32xf32>
    %131 = arith.mulf %11, %130 : vector<8x32xf32>
    %132 = arith.addf %116, %131 : vector<8x32xf32>
    %c19 = arith.constant 19 : index
    %133 = memref.load %arg0[%c19] : memref<91xf32, #tpu.memory_space<smem>>
    %134 = vector.broadcast %133 : f32 to vector<8x32xf32>
    %135 = arith.mulf %10, %134 : vector<8x32xf32>
    %136 = arith.addf %120, %135 : vector<8x32xf32>
    %c39 = arith.constant 39 : index
    %137 = memref.load %arg0[%c39] : memref<91xf32, #tpu.memory_space<smem>>
    %138 = vector.broadcast %137 : f32 to vector<8x32xf32>
    %139 = arith.mulf %10, %138 : vector<8x32xf32>
    %140 = arith.addf %124, %139 : vector<8x32xf32>
    %c59 = arith.constant 59 : index
    %141 = memref.load %arg0[%c59] : memref<91xf32, #tpu.memory_space<smem>>
    %142 = vector.broadcast %141 : f32 to vector<8x32xf32>
    %143 = arith.mulf %10, %142 : vector<8x32xf32>
    %144 = arith.addf %128, %143 : vector<8x32xf32>
    %c79 = arith.constant 79 : index
    %145 = memref.load %arg0[%c79] : memref<91xf32, #tpu.memory_space<smem>>
    %146 = vector.broadcast %145 : f32 to vector<8x32xf32>
    %147 = arith.mulf %10, %146 : vector<8x32xf32>
    %148 = arith.addf %132, %147 : vector<8x32xf32>
    %c20 = arith.constant 20 : index
    %149 = memref.load %arg0[%c20] : memref<91xf32, #tpu.memory_space<smem>>
    %150 = vector.broadcast %149 : f32 to vector<8x32xf32>
    %151 = arith.mulf %12, %150 : vector<8x32xf32>
    %152 = arith.addf %136, %151 : vector<8x32xf32>
    %c40 = arith.constant 40 : index
    %153 = memref.load %arg0[%c40] : memref<91xf32, #tpu.memory_space<smem>>
    %154 = vector.broadcast %153 : f32 to vector<8x32xf32>
    %155 = arith.mulf %12, %154 : vector<8x32xf32>
    %156 = arith.addf %140, %155 : vector<8x32xf32>
    %c60 = arith.constant 60 : index
    %157 = memref.load %arg0[%c60] : memref<91xf32, #tpu.memory_space<smem>>
    %158 = vector.broadcast %157 : f32 to vector<8x32xf32>
    %159 = arith.mulf %12, %158 : vector<8x32xf32>
    %160 = arith.addf %144, %159 : vector<8x32xf32>
    %c80 = arith.constant 80 : index
    %161 = memref.load %arg0[%c80] : memref<91xf32, #tpu.memory_space<smem>>
    %162 = vector.broadcast %161 : f32 to vector<8x32xf32>
    %163 = arith.mulf %12, %162 : vector<8x32xf32>
    %164 = arith.addf %148, %163 : vector<8x32xf32>
    %165 = arith.mulf %7, %6 : vector<8x32xf32>
    %c21 = arith.constant 21 : index
    %166 = memref.load %arg0[%c21] : memref<91xf32, #tpu.memory_space<smem>>
    %167 = vector.broadcast %166 : f32 to vector<8x32xf32>
    %168 = arith.mulf %165, %167 : vector<8x32xf32>
    %169 = arith.addf %152, %168 : vector<8x32xf32>
    %c41 = arith.constant 41 : index
    %170 = memref.load %arg0[%c41] : memref<91xf32, #tpu.memory_space<smem>>
    %171 = vector.broadcast %170 : f32 to vector<8x32xf32>
    %172 = arith.mulf %165, %171 : vector<8x32xf32>
    %173 = arith.addf %156, %172 : vector<8x32xf32>
    %c61 = arith.constant 61 : index
    %174 = memref.load %arg0[%c61] : memref<91xf32, #tpu.memory_space<smem>>
    %175 = vector.broadcast %174 : f32 to vector<8x32xf32>
    %176 = arith.mulf %165, %175 : vector<8x32xf32>
    %177 = arith.addf %160, %176 : vector<8x32xf32>
    %c81 = arith.constant 81 : index
    %178 = memref.load %arg0[%c81] : memref<91xf32, #tpu.memory_space<smem>>
    %179 = vector.broadcast %178 : f32 to vector<8x32xf32>
    %180 = arith.mulf %165, %179 : vector<8x32xf32>
    %181 = arith.addf %164, %180 : vector<8x32xf32>
    %182 = arith.mulf %11, %4 : vector<8x32xf32>
    %c22 = arith.constant 22 : index
    %183 = memref.load %arg0[%c22] : memref<91xf32, #tpu.memory_space<smem>>
    %184 = vector.broadcast %183 : f32 to vector<8x32xf32>
    %185 = arith.mulf %182, %184 : vector<8x32xf32>
    %186 = arith.addf %169, %185 : vector<8x32xf32>
    %c42 = arith.constant 42 : index
    %187 = memref.load %arg0[%c42] : memref<91xf32, #tpu.memory_space<smem>>
    %188 = vector.broadcast %187 : f32 to vector<8x32xf32>
    %189 = arith.mulf %182, %188 : vector<8x32xf32>
    %190 = arith.addf %173, %189 : vector<8x32xf32>
    %c62 = arith.constant 62 : index
    %191 = memref.load %arg0[%c62] : memref<91xf32, #tpu.memory_space<smem>>
    %192 = vector.broadcast %191 : f32 to vector<8x32xf32>
    %193 = arith.mulf %182, %192 : vector<8x32xf32>
    %194 = arith.addf %177, %193 : vector<8x32xf32>
    %c82 = arith.constant 82 : index
    %195 = memref.load %arg0[%c82] : memref<91xf32, #tpu.memory_space<smem>>
    %196 = vector.broadcast %195 : f32 to vector<8x32xf32>
    %197 = arith.mulf %182, %196 : vector<8x32xf32>
    %198 = arith.addf %181, %197 : vector<8x32xf32>
    %199 = arith.mulf %4, %10 : vector<8x32xf32>
    %c23 = arith.constant 23 : index
    %200 = memref.load %arg0[%c23] : memref<91xf32, #tpu.memory_space<smem>>
    %201 = vector.broadcast %200 : f32 to vector<8x32xf32>
    %202 = arith.mulf %199, %201 : vector<8x32xf32>
    %203 = arith.addf %186, %202 : vector<8x32xf32>
    %c43 = arith.constant 43 : index
    %204 = memref.load %arg0[%c43] : memref<91xf32, #tpu.memory_space<smem>>
    %205 = vector.broadcast %204 : f32 to vector<8x32xf32>
    %206 = arith.mulf %199, %205 : vector<8x32xf32>
    %207 = arith.addf %190, %206 : vector<8x32xf32>
    %c63 = arith.constant 63 : index
    %208 = memref.load %arg0[%c63] : memref<91xf32, #tpu.memory_space<smem>>
    %209 = vector.broadcast %208 : f32 to vector<8x32xf32>
    %210 = arith.mulf %199, %209 : vector<8x32xf32>
    %211 = arith.addf %194, %210 : vector<8x32xf32>
    %c83 = arith.constant 83 : index
    %212 = memref.load %arg0[%c83] : memref<91xf32, #tpu.memory_space<smem>>
    %213 = vector.broadcast %212 : f32 to vector<8x32xf32>
    %214 = arith.mulf %199, %213 : vector<8x32xf32>
    %215 = arith.addf %198, %214 : vector<8x32xf32>
    %216 = arith.mulf %4, %12 : vector<8x32xf32>
    %c24 = arith.constant 24 : index
    %217 = memref.load %arg0[%c24] : memref<91xf32, #tpu.memory_space<smem>>
    %218 = vector.broadcast %217 : f32 to vector<8x32xf32>
    %219 = arith.mulf %216, %218 : vector<8x32xf32>
    %220 = arith.addf %203, %219 : vector<8x32xf32>
    %c44 = arith.constant 44 : index
    %221 = memref.load %arg0[%c44] : memref<91xf32, #tpu.memory_space<smem>>
    %222 = vector.broadcast %221 : f32 to vector<8x32xf32>
    %223 = arith.mulf %216, %222 : vector<8x32xf32>
    %224 = arith.addf %207, %223 : vector<8x32xf32>
    %c64 = arith.constant 64 : index
    %225 = memref.load %arg0[%c64] : memref<91xf32, #tpu.memory_space<smem>>
    %226 = vector.broadcast %225 : f32 to vector<8x32xf32>
    %227 = arith.mulf %216, %226 : vector<8x32xf32>
    %228 = arith.addf %211, %227 : vector<8x32xf32>
    %c84 = arith.constant 84 : index
    %229 = memref.load %arg0[%c84] : memref<91xf32, #tpu.memory_space<smem>>
    %230 = vector.broadcast %229 : f32 to vector<8x32xf32>
    %231 = arith.mulf %216, %230 : vector<8x32xf32>
    %232 = arith.addf %215, %231 : vector<8x32xf32>
    %233 = arith.mulf %11, %2 : vector<8x32xf32>
    %c25 = arith.constant 25 : index
    %234 = memref.load %arg0[%c25] : memref<91xf32, #tpu.memory_space<smem>>
    %235 = vector.broadcast %234 : f32 to vector<8x32xf32>
    %236 = arith.mulf %233, %235 : vector<8x32xf32>
    %237 = arith.addf %220, %236 : vector<8x32xf32>
    %c45 = arith.constant 45 : index
    %238 = memref.load %arg0[%c45] : memref<91xf32, #tpu.memory_space<smem>>
    %239 = vector.broadcast %238 : f32 to vector<8x32xf32>
    %240 = arith.mulf %233, %239 : vector<8x32xf32>
    %241 = arith.addf %224, %240 : vector<8x32xf32>
    %c65 = arith.constant 65 : index
    %242 = memref.load %arg0[%c65] : memref<91xf32, #tpu.memory_space<smem>>
    %243 = vector.broadcast %242 : f32 to vector<8x32xf32>
    %244 = arith.mulf %233, %243 : vector<8x32xf32>
    %245 = arith.addf %228, %244 : vector<8x32xf32>
    %c85 = arith.constant 85 : index
    %246 = memref.load %arg0[%c85] : memref<91xf32, #tpu.memory_space<smem>>
    %247 = vector.broadcast %246 : f32 to vector<8x32xf32>
    %248 = arith.mulf %233, %247 : vector<8x32xf32>
    %249 = arith.addf %232, %248 : vector<8x32xf32>
    %250 = arith.mulf %10, %2 : vector<8x32xf32>
    %c26 = arith.constant 26 : index
    %251 = memref.load %arg0[%c26] : memref<91xf32, #tpu.memory_space<smem>>
    %252 = vector.broadcast %251 : f32 to vector<8x32xf32>
    %253 = arith.mulf %250, %252 : vector<8x32xf32>
    %254 = arith.addf %237, %253 : vector<8x32xf32>
    %c46 = arith.constant 46 : index
    %255 = memref.load %arg0[%c46] : memref<91xf32, #tpu.memory_space<smem>>
    %256 = vector.broadcast %255 : f32 to vector<8x32xf32>
    %257 = arith.mulf %250, %256 : vector<8x32xf32>
    %258 = arith.addf %241, %257 : vector<8x32xf32>
    %c66 = arith.constant 66 : index
    %259 = memref.load %arg0[%c66] : memref<91xf32, #tpu.memory_space<smem>>
    %260 = vector.broadcast %259 : f32 to vector<8x32xf32>
    %261 = arith.mulf %250, %260 : vector<8x32xf32>
    %262 = arith.addf %245, %261 : vector<8x32xf32>
    %c86 = arith.constant 86 : index
    %263 = memref.load %arg0[%c86] : memref<91xf32, #tpu.memory_space<smem>>
    %264 = vector.broadcast %263 : f32 to vector<8x32xf32>
    %265 = arith.mulf %250, %264 : vector<8x32xf32>
    %266 = arith.addf %249, %265 : vector<8x32xf32>
    %267 = arith.mulf %2, %12 : vector<8x32xf32>
    %c27 = arith.constant 27 : index
    %268 = memref.load %arg0[%c27] : memref<91xf32, #tpu.memory_space<smem>>
    %269 = vector.broadcast %268 : f32 to vector<8x32xf32>
    %270 = arith.mulf %267, %269 : vector<8x32xf32>
    %271 = arith.addf %254, %270 : vector<8x32xf32>
    %c47 = arith.constant 47 : index
    %272 = memref.load %arg0[%c47] : memref<91xf32, #tpu.memory_space<smem>>
    %273 = vector.broadcast %272 : f32 to vector<8x32xf32>
    %274 = arith.mulf %267, %273 : vector<8x32xf32>
    %275 = arith.addf %258, %274 : vector<8x32xf32>
    %c67 = arith.constant 67 : index
    %276 = memref.load %arg0[%c67] : memref<91xf32, #tpu.memory_space<smem>>
    %277 = vector.broadcast %276 : f32 to vector<8x32xf32>
    %278 = arith.mulf %267, %277 : vector<8x32xf32>
    %279 = arith.addf %262, %278 : vector<8x32xf32>
    %c87 = arith.constant 87 : index
    %280 = memref.load %arg0[%c87] : memref<91xf32, #tpu.memory_space<smem>>
    %281 = vector.broadcast %280 : f32 to vector<8x32xf32>
    %282 = arith.mulf %267, %281 : vector<8x32xf32>
    %283 = arith.addf %266, %282 : vector<8x32xf32>
    %284 = arith.mulf %11, %6 : vector<8x32xf32>
    %c28 = arith.constant 28 : index
    %285 = memref.load %arg0[%c28] : memref<91xf32, #tpu.memory_space<smem>>
    %286 = vector.broadcast %285 : f32 to vector<8x32xf32>
    %287 = arith.mulf %284, %286 : vector<8x32xf32>
    %288 = arith.addf %271, %287 : vector<8x32xf32>
    %c48 = arith.constant 48 : index
    %289 = memref.load %arg0[%c48] : memref<91xf32, #tpu.memory_space<smem>>
    %290 = vector.broadcast %289 : f32 to vector<8x32xf32>
    %291 = arith.mulf %284, %290 : vector<8x32xf32>
    %292 = arith.addf %275, %291 : vector<8x32xf32>
    %c68 = arith.constant 68 : index
    %293 = memref.load %arg0[%c68] : memref<91xf32, #tpu.memory_space<smem>>
    %294 = vector.broadcast %293 : f32 to vector<8x32xf32>
    %295 = arith.mulf %284, %294 : vector<8x32xf32>
    %296 = arith.addf %279, %295 : vector<8x32xf32>
    %c88 = arith.constant 88 : index
    %297 = memref.load %arg0[%c88] : memref<91xf32, #tpu.memory_space<smem>>
    %298 = vector.broadcast %297 : f32 to vector<8x32xf32>
    %299 = arith.mulf %284, %298 : vector<8x32xf32>
    %300 = arith.addf %283, %299 : vector<8x32xf32>
    %301 = arith.mulf %10, %6 : vector<8x32xf32>
    %c29 = arith.constant 29 : index
    %302 = memref.load %arg0[%c29] : memref<91xf32, #tpu.memory_space<smem>>
    %303 = vector.broadcast %302 : f32 to vector<8x32xf32>
    %304 = arith.mulf %301, %303 : vector<8x32xf32>
    %305 = arith.addf %288, %304 : vector<8x32xf32>
    %c49 = arith.constant 49 : index
    %306 = memref.load %arg0[%c49] : memref<91xf32, #tpu.memory_space<smem>>
    %307 = vector.broadcast %306 : f32 to vector<8x32xf32>
    %308 = arith.mulf %301, %307 : vector<8x32xf32>
    %309 = arith.addf %292, %308 : vector<8x32xf32>
    %c69 = arith.constant 69 : index
    %310 = memref.load %arg0[%c69] : memref<91xf32, #tpu.memory_space<smem>>
    %311 = vector.broadcast %310 : f32 to vector<8x32xf32>
    %312 = arith.mulf %301, %311 : vector<8x32xf32>
    %313 = arith.addf %296, %312 : vector<8x32xf32>
    %c89 = arith.constant 89 : index
    %314 = memref.load %arg0[%c89] : memref<91xf32, #tpu.memory_space<smem>>
    %315 = vector.broadcast %314 : f32 to vector<8x32xf32>
    %316 = arith.mulf %301, %315 : vector<8x32xf32>
    %317 = arith.addf %300, %316 : vector<8x32xf32>
    %318 = arith.mulf %12, %6 : vector<8x32xf32>
    %c30 = arith.constant 30 : index
    %319 = memref.load %arg0[%c30] : memref<91xf32, #tpu.memory_space<smem>>
    %320 = vector.broadcast %319 : f32 to vector<8x32xf32>
    %321 = arith.mulf %318, %320 : vector<8x32xf32>
    %322 = arith.addf %305, %321 : vector<8x32xf32>
    %c50 = arith.constant 50 : index
    %323 = memref.load %arg0[%c50] : memref<91xf32, #tpu.memory_space<smem>>
    %324 = vector.broadcast %323 : f32 to vector<8x32xf32>
    %325 = arith.mulf %318, %324 : vector<8x32xf32>
    %326 = arith.addf %309, %325 : vector<8x32xf32>
    %c70 = arith.constant 70 : index
    %327 = memref.load %arg0[%c70] : memref<91xf32, #tpu.memory_space<smem>>
    %328 = vector.broadcast %327 : f32 to vector<8x32xf32>
    %329 = arith.mulf %318, %328 : vector<8x32xf32>
    %330 = arith.addf %313, %329 : vector<8x32xf32>
    %c90 = arith.constant 90 : index
    %331 = memref.load %arg0[%c90] : memref<91xf32, #tpu.memory_space<smem>>
    %332 = vector.broadcast %331 : f32 to vector<8x32xf32>
    %333 = arith.mulf %318, %332 : vector<8x32xf32>
    %334 = arith.addf %317, %333 : vector<8x32xf32>
    %335 = arith.divf %322, %326 : vector<8x32xf32>
    %c8 = arith.constant 8 : index
    %336 = memref.load %arg0[%c8] : memref<91xf32, #tpu.memory_space<smem>>
    %337 = vector.broadcast %336 : f32 to vector<8x32xf32>
    %338 = arith.mulf %335, %337 : vector<8x32xf32>
    %c7 = arith.constant 7 : index
    %339 = memref.load %arg0[%c7] : memref<91xf32, #tpu.memory_space<smem>>
    %340 = vector.broadcast %339 : f32 to vector<8x32xf32>
    %341 = arith.addf %338, %340 : vector<8x32xf32>
    %342 = arith.divf %330, %334 : vector<8x32xf32>
    %c10_7 = arith.constant 10 : index
    %343 = memref.load %arg0[%c10_7] : memref<91xf32, #tpu.memory_space<smem>>
    %344 = vector.broadcast %343 : f32 to vector<8x32xf32>
    %345 = arith.mulf %342, %344 : vector<8x32xf32>
    %c9_8 = arith.constant 9 : index
    %346 = memref.load %arg0[%c9_8] : memref<91xf32, #tpu.memory_space<smem>>
    %347 = vector.broadcast %346 : f32 to vector<8x32xf32>
    %348 = arith.addf %345, %347 : vector<8x32xf32>
    %c0_9 = arith.constant 0 : index
    %c0_10 = arith.constant 0 : index
    %c0_11 = arith.constant 0 : index
    %349 = vector.load %arg1[%c0_9, %c0_10, %c0_11] : memref<12x8x32xf32, #tpu.memory_space<vmem>>, vector<1x8x32xf32>
    %350 = vector.shape_cast %349 : vector<1x8x32xf32> to vector<8x32xf32>
    %c1 = arith.constant 1 : index
    %c0_12 = arith.constant 0 : index
    %c0_13 = arith.constant 0 : index
    %351 = vector.load %arg1[%c1, %c0_12, %c0_13] : memref<12x8x32xf32, #tpu.memory_space<vmem>>, vector<1x8x32xf32>
    %352 = vector.shape_cast %351 : vector<1x8x32xf32> to vector<8x32xf32>
    %c2 = arith.constant 2 : index
    %c0_14 = arith.constant 0 : index
    %c0_15 = arith.constant 0 : index
    %353 = vector.load %arg1[%c2, %c0_14, %c0_15] : memref<12x8x32xf32, #tpu.memory_space<vmem>>, vector<1x8x32xf32>
    %354 = vector.shape_cast %353 : vector<1x8x32xf32> to vector<8x32xf32>
    %c3 = arith.constant 3 : index
    %c0_16 = arith.constant 0 : index
    %c0_17 = arith.constant 0 : index
    %355 = vector.load %arg1[%c3, %c0_16, %c0_17] : memref<12x8x32xf32, #tpu.memory_space<vmem>>, vector<1x8x32xf32>
    %356 = vector.shape_cast %355 : vector<1x8x32xf32> to vector<8x32xf32>
    %c4 = arith.constant 4 : index
    %c0_18 = arith.constant 0 : index
    %c0_19 = arith.constant 0 : index
    %357 = vector.load %arg1[%c4, %c0_18, %c0_19] : memref<12x8x32xf32, #tpu.memory_space<vmem>>, vector<1x8x32xf32>
    %358 = vector.shape_cast %357 : vector<1x8x32xf32> to vector<8x32xf32>
    %c5 = arith.constant 5 : index
    %c0_20 = arith.constant 0 : index
    %c0_21 = arith.constant 0 : index
    %359 = vector.load %arg1[%c5, %c0_20, %c0_21] : memref<12x8x32xf32, #tpu.memory_space<vmem>>, vector<1x8x32xf32>
    %360 = vector.shape_cast %359 : vector<1x8x32xf32> to vector<8x32xf32>
    %c6 = arith.constant 6 : index
    %c0_22 = arith.constant 0 : index
    %c0_23 = arith.constant 0 : index
    %361 = vector.load %arg1[%c6, %c0_22, %c0_23] : memref<12x8x32xf32, #tpu.memory_space<vmem>>, vector<1x8x32xf32>
    %362 = vector.shape_cast %361 : vector<1x8x32xf32> to vector<8x32xf32>
    %c7_24 = arith.constant 7 : index
    %c0_25 = arith.constant 0 : index
    %c0_26 = arith.constant 0 : index
    %363 = vector.load %arg1[%c7_24, %c0_25, %c0_26] : memref<12x8x32xf32, #tpu.memory_space<vmem>>, vector<1x8x32xf32>
    %364 = vector.shape_cast %363 : vector<1x8x32xf32> to vector<8x32xf32>
    %c8_27 = arith.constant 8 : index
    %c0_28 = arith.constant 0 : index
    %c0_29 = arith.constant 0 : index
    %365 = vector.load %arg1[%c8_27, %c0_28, %c0_29] : memref<12x8x32xf32, #tpu.memory_space<vmem>>, vector<1x8x32xf32>
    %366 = vector.shape_cast %365 : vector<1x8x32xf32> to vector<8x32xf32>
    %cst = arith.constant 4.000000e-01 : f32
    %367 = arith.mulf %0, %cst : f32
    %cst_30 = arith.constant 5.000000e-01 : f32
    %368 = arith.addf %cst_30, %367 : f32
    %cst_31 = arith.constant 4.000000e-01 : f32
    %369 = arith.mulf %0, %cst_31 : f32
    %cst_32 = arith.constant 5.000000e-01 : f32
    %370 = arith.subf %cst_32, %369 : f32
    %cst_33 = arith.constant 5.000000e-01 : f32
    %371 = vector.broadcast %cst_33 : f32 to vector<8x32xf32>
    %372 = arith.cmpf ogt, %356, %371 : vector<8x32xf32>
    %cst_34 = arith.constant 5.000000e-01 : f32
    %373 = vector.broadcast %cst_34 : f32 to vector<8x32xf32>
    %374 = arith.cmpf olt, %356, %373 : vector<8x32xf32>
    %375 = vector.broadcast %370 : f32 to vector<8x32xf32>
    %376 = arith.select %374, %375, %356 : vector<8x32xi1>, vector<8x32xf32>
    %377 = vector.broadcast %368 : f32 to vector<8x32xf32>
    %378 = arith.select %372, %377, %376 : vector<8x32xi1>, vector<8x32xf32>
    %379 = arith.subf %341, %358 : vector<8x32xf32>
    %380 = arith.subf %348, %360 : vector<8x32xf32>
    %381 = arith.subf %350, %362 : vector<8x32xf32>
    %382 = arith.mulf %381, %381 : vector<8x32xf32>
    %383 = arith.subf %352, %364 : vector<8x32xf32>
    %384 = arith.mulf %383, %383 : vector<8x32xf32>
    %385 = arith.addf %382, %384 : vector<8x32xf32>
    %386 = math.sqrt %385 : vector<8x32xf32>
    %387 = arith.subf %354, %366 : vector<8x32xf32>
    %388 = math.absf %387 : vector<8x32xf32>
    %389 = arith.mulf %379, %379 : vector<8x32xf32>
    %390 = arith.mulf %380, %380 : vector<8x32xf32>
    %391 = arith.addf %389, %390 : vector<8x32xf32>
    %392 = math.sqrt %391 : vector<8x32xf32>
    %cst_35 = arith.constant dense<0.000000e+00> : vector<8xf32>
    %393 = vector.multi_reduction <add>, %378, %cst_35 [1] : vector<8x32xf32> to vector<8xf32>
    %394 = vector.shape_cast %393 : vector<8xf32> to vector<8x1xf32>
    %cst_36 = arith.constant dense<0.000000e+00> : vector<1xf32>
    %395 = vector.multi_reduction <add>, %394, %cst_36 [0] : vector<8x1xf32> to vector<1xf32>
    %396 = vector.shape_cast %395 : vector<1xf32> to vector<1x1xf32>
    %cst_37 = arith.constant 3.906250e-03 : f32
    %397 = vector.broadcast %cst_37 : f32 to vector<1x1xf32>
    %398 = arith.mulf %396, %397 : vector<1x1xf32>
    %cst_38 = arith.constant dense<0.000000e+00> : vector<8xf32>
    %399 = vector.multi_reduction <add>, %341, %cst_38 [1] : vector<8x32xf32> to vector<8xf32>
    %400 = vector.shape_cast %399 : vector<8xf32> to vector<8x1xf32>
    %cst_39 = arith.constant dense<0.000000e+00> : vector<1xf32>
    %401 = vector.multi_reduction <add>, %400, %cst_39 [0] : vector<8x1xf32> to vector<1xf32>
    %402 = vector.shape_cast %401 : vector<1xf32> to vector<1x1xf32>
    %cst_40 = arith.constant dense<0.000000e+00> : vector<8xf32>
    %403 = vector.multi_reduction <add>, %358, %cst_40 [1] : vector<8x32xf32> to vector<8xf32>
    %404 = vector.shape_cast %403 : vector<8xf32> to vector<8x1xf32>
    %cst_41 = arith.constant dense<0.000000e+00> : vector<1xf32>
    %405 = vector.multi_reduction <add>, %404, %cst_41 [0] : vector<8x1xf32> to vector<1xf32>
    %406 = vector.shape_cast %405 : vector<1xf32> to vector<1x1xf32>
    %407 = arith.subf %402, %406 : vector<1x1xf32>
    %cst_42 = arith.constant 3.906250e-03 : f32
    %408 = vector.broadcast %cst_42 : f32 to vector<1x1xf32>
    %409 = arith.mulf %407, %408 : vector<1x1xf32>
    %cst_43 = arith.constant dense<0.000000e+00> : vector<8xf32>
    %410 = vector.multi_reduction <add>, %348, %cst_43 [1] : vector<8x32xf32> to vector<8xf32>
    %411 = vector.shape_cast %410 : vector<8xf32> to vector<8x1xf32>
    %cst_44 = arith.constant dense<0.000000e+00> : vector<1xf32>
    %412 = vector.multi_reduction <add>, %411, %cst_44 [0] : vector<8x1xf32> to vector<1xf32>
    %413 = vector.shape_cast %412 : vector<1xf32> to vector<1x1xf32>
    %cst_45 = arith.constant dense<0.000000e+00> : vector<8xf32>
    %414 = vector.multi_reduction <add>, %360, %cst_45 [1] : vector<8x32xf32> to vector<8xf32>
    %415 = vector.shape_cast %414 : vector<8xf32> to vector<8x1xf32>
    %cst_46 = arith.constant dense<0.000000e+00> : vector<1xf32>
    %416 = vector.multi_reduction <add>, %415, %cst_46 [0] : vector<8x1xf32> to vector<1xf32>
    %417 = vector.shape_cast %416 : vector<1xf32> to vector<1x1xf32>
    %418 = arith.subf %413, %417 : vector<1x1xf32>
    %cst_47 = arith.constant 3.906250e-03 : f32
    %419 = vector.broadcast %cst_47 : f32 to vector<1x1xf32>
    %420 = arith.mulf %418, %419 : vector<1x1xf32>
    %421 = vector.broadcast %398 : vector<1x1xf32> to vector<8x32xf32>
    %422 = arith.subf %378, %421 : vector<8x32xf32>
    %cst_48 = arith.constant 1.000000e+00 : f32
    %423 = vector.broadcast %cst_48 : f32 to vector<8x32xf32>
    %424 = arith.addf %422, %423 : vector<8x32xf32>
    %cst_49 = arith.constant 0.000000e+00 : f32
    %425 = vector.broadcast %cst_49 : f32 to vector<8x32xf32>
    %426 = arith.maximumf %424, %425 : vector<8x32xf32>
    %427 = vector.broadcast %409 : vector<1x1xf32> to vector<8x32xf32>
    %428 = arith.addf %358, %427 : vector<8x32xf32>
    %429 = arith.subf %428, %341 : vector<8x32xf32>
    %430 = vector.broadcast %420 : vector<1x1xf32> to vector<8x32xf32>
    %431 = arith.addf %360, %430 : vector<8x32xf32>
    %432 = arith.subf %431, %348 : vector<8x32xf32>
    %433 = arith.mulf %429, %429 : vector<8x32xf32>
    %434 = arith.mulf %432, %432 : vector<8x32xf32>
    %435 = arith.addf %433, %434 : vector<8x32xf32>
    %436 = math.sqrt %435 : vector<8x32xf32>
    %437 = arith.mulf %386, %426 : vector<8x32xf32>
    %cst_50 = arith.constant dense<0.000000e+00> : vector<8xf32>
    %438 = vector.multi_reduction <add>, %437, %cst_50 [1] : vector<8x32xf32> to vector<8xf32>
    %439 = vector.shape_cast %438 : vector<8xf32> to vector<8x1xf32>
    %cst_51 = arith.constant dense<0.000000e+00> : vector<1xf32>
    %440 = vector.multi_reduction <add>, %439, %cst_51 [0] : vector<8x1xf32> to vector<1xf32>
    %441 = vector.shape_cast %440 : vector<1xf32> to vector<1x1xf32>
    %cst_52 = arith.constant 3.906250e-03 : f32
    %442 = vector.broadcast %cst_52 : f32 to vector<1x1xf32>
    %443 = arith.mulf %441, %442 : vector<1x1xf32>
    %444 = arith.mulf %388, %426 : vector<8x32xf32>
    %cst_53 = arith.constant dense<0.000000e+00> : vector<8xf32>
    %445 = vector.multi_reduction <add>, %444, %cst_53 [1] : vector<8x32xf32> to vector<8xf32>
    %446 = vector.shape_cast %445 : vector<8xf32> to vector<8x1xf32>
    %cst_54 = arith.constant dense<0.000000e+00> : vector<1xf32>
    %447 = vector.multi_reduction <add>, %446, %cst_54 [0] : vector<8x1xf32> to vector<1xf32>
    %448 = vector.shape_cast %447 : vector<1xf32> to vector<1x1xf32>
    %cst_55 = arith.constant 3.906250e-03 : f32
    %449 = vector.broadcast %cst_55 : f32 to vector<1x1xf32>
    %450 = arith.mulf %448, %449 : vector<1x1xf32>
    %451 = arith.mulf %392, %426 : vector<8x32xf32>
    %cst_56 = arith.constant dense<0.000000e+00> : vector<8xf32>
    %452 = vector.multi_reduction <add>, %451, %cst_56 [1] : vector<8x32xf32> to vector<8xf32>
    %453 = vector.shape_cast %452 : vector<8xf32> to vector<8x1xf32>
    %cst_57 = arith.constant dense<0.000000e+00> : vector<1xf32>
    %454 = vector.multi_reduction <add>, %453, %cst_57 [0] : vector<8x1xf32> to vector<1xf32>
    %455 = vector.shape_cast %454 : vector<1xf32> to vector<1x1xf32>
    %cst_58 = arith.constant 3.906250e-03 : f32
    %456 = vector.broadcast %cst_58 : f32 to vector<1x1xf32>
    %457 = arith.mulf %455, %456 : vector<1x1xf32>
    %458 = arith.mulf %379, %426 : vector<8x32xf32>
    %cst_59 = arith.constant dense<0.000000e+00> : vector<8xf32>
    %459 = vector.multi_reduction <add>, %458, %cst_59 [1] : vector<8x32xf32> to vector<8xf32>
    %460 = vector.shape_cast %459 : vector<8xf32> to vector<8x1xf32>
    %cst_60 = arith.constant dense<0.000000e+00> : vector<1xf32>
    %461 = vector.multi_reduction <add>, %460, %cst_60 [0] : vector<8x1xf32> to vector<1xf32>
    %462 = vector.shape_cast %461 : vector<1xf32> to vector<1x1xf32>
    %cst_61 = arith.constant 3.906250e-03 : f32
    %463 = vector.broadcast %cst_61 : f32 to vector<1x1xf32>
    %464 = arith.mulf %462, %463 : vector<1x1xf32>
    %465 = arith.mulf %380, %426 : vector<8x32xf32>
    %cst_62 = arith.constant dense<0.000000e+00> : vector<8xf32>
    %466 = vector.multi_reduction <add>, %465, %cst_62 [1] : vector<8x32xf32> to vector<8xf32>
    %467 = vector.shape_cast %466 : vector<8xf32> to vector<8x1xf32>
    %cst_63 = arith.constant dense<0.000000e+00> : vector<1xf32>
    %468 = vector.multi_reduction <add>, %467, %cst_63 [0] : vector<8x1xf32> to vector<1xf32>
    %469 = vector.shape_cast %468 : vector<1xf32> to vector<1x1xf32>
    %cst_64 = arith.constant 3.906250e-03 : f32
    %470 = vector.broadcast %cst_64 : f32 to vector<1x1xf32>
    %471 = arith.mulf %469, %470 : vector<1x1xf32>
    %472 = arith.mulf %464, %464 : vector<1x1xf32>
    %473 = arith.mulf %471, %471 : vector<1x1xf32>
    %474 = arith.addf %472, %473 : vector<1x1xf32>
    %475 = math.sqrt %474 : vector<1x1xf32>
    %cst_65 = arith.constant dense<0.000000e+00> : vector<8xf32>
    %476 = vector.multi_reduction <add>, %436, %cst_65 [1] : vector<8x32xf32> to vector<8xf32>
    %477 = vector.shape_cast %476 : vector<8xf32> to vector<8x1xf32>
    %cst_66 = arith.constant dense<0.000000e+00> : vector<1xf32>
    %478 = vector.multi_reduction <add>, %477, %cst_66 [0] : vector<8x1xf32> to vector<1xf32>
    %479 = vector.shape_cast %478 : vector<1xf32> to vector<1x1xf32>
    %cst_67 = arith.constant 3.906250e-03 : f32
    %480 = vector.broadcast %cst_67 : f32 to vector<1x1xf32>
    %481 = arith.mulf %479, %480 : vector<1x1xf32>
    %482 = arith.mulf %436, %436 : vector<8x32xf32>
    %cst_68 = arith.constant dense<0.000000e+00> : vector<8xf32>
    %483 = vector.multi_reduction <add>, %482, %cst_68 [1] : vector<8x32xf32> to vector<8xf32>
    %484 = vector.shape_cast %483 : vector<8xf32> to vector<8x1xf32>
    %cst_69 = arith.constant dense<0.000000e+00> : vector<1xf32>
    %485 = vector.multi_reduction <add>, %484, %cst_69 [0] : vector<8x1xf32> to vector<1xf32>
    %486 = vector.shape_cast %485 : vector<1xf32> to vector<1x1xf32>
    %cst_70 = arith.constant 2.560000e+02 : f32
    %487 = vector.broadcast %cst_70 : f32 to vector<1x1xf32>
    %488 = arith.mulf %487, %481 : vector<1x1xf32>
    %489 = arith.mulf %488, %481 : vector<1x1xf32>
    %490 = arith.subf %486, %489 : vector<1x1xf32>
    %cst_71 = arith.constant 0.00392156886 : f32
    %491 = vector.broadcast %cst_71 : f32 to vector<1x1xf32>
    %492 = arith.mulf %490, %491 : vector<1x1xf32>
    %cst_72 = arith.constant 0.000000e+00 : f32
    %493 = vector.broadcast %cst_72 : f32 to vector<1x1xf32>
    %494 = arith.maximumf %492, %493 : vector<1x1xf32>
    %495 = math.sqrt %494 : vector<1x1xf32>
    %cst_73 = arith.constant 5.000000e-01 : f32
    %496 = vector.broadcast %cst_73 : f32 to vector<8x32xf32>
    %497 = arith.cmpf ogt, %426, %496 : vector<8x32xf32>
    %498 = arith.addf %481, %495 : vector<1x1xf32>
    %499 = vector.broadcast %498 : vector<1x1xf32> to vector<8x32xf32>
    %500 = arith.cmpf olt, %436, %499 : vector<8x32xf32>
    %501 = arith.andi %497, %500 : vector<8x32xi1>
    %502 = arith.extui %501 : vector<8x32xi1> to vector<8x32xi32>
    %503 = arith.sitofp %502 : vector<8x32xi32> to vector<8x32xf32>
    %cst_74 = arith.constant dense<0.000000e+00> : vector<8xf32>
    %504 = vector.multi_reduction <add>, %503, %cst_74 [1] : vector<8x32xf32> to vector<8xf32>
    %505 = vector.shape_cast %504 : vector<8xf32> to vector<8x1xf32>
    %cst_75 = arith.constant dense<0.000000e+00> : vector<1xf32>
    %506 = vector.multi_reduction <add>, %505, %cst_75 [0] : vector<8x1xf32> to vector<1xf32>
    %507 = vector.shape_cast %506 : vector<1xf32> to vector<1x1xf32>
    %cst_76 = arith.constant 1.000000e+00 : f32
    %508 = vector.broadcast %cst_76 : f32 to vector<1x1xf32>
    %509 = arith.maximumf %507, %508 : vector<1x1xf32>
    %cst_77 = arith.constant 1.000000e+00 : f32
    %510 = vector.broadcast %cst_77 : f32 to vector<1x1xf32>
    %511 = arith.divf %510, %509 : vector<1x1xf32>
    %512 = arith.mulf %503, %358 : vector<8x32xf32>
    %cst_78 = arith.constant dense<0.000000e+00> : vector<8xf32>
    %513 = vector.multi_reduction <add>, %512, %cst_78 [1] : vector<8x32xf32> to vector<8xf32>
    %514 = vector.shape_cast %513 : vector<8xf32> to vector<8x1xf32>
    %cst_79 = arith.constant dense<0.000000e+00> : vector<1xf32>
    %515 = vector.multi_reduction <add>, %514, %cst_79 [0] : vector<8x1xf32> to vector<1xf32>
    %516 = vector.shape_cast %515 : vector<1xf32> to vector<1x1xf32>
    %517 = arith.mulf %516, %511 : vector<1x1xf32>
    %518 = arith.mulf %503, %360 : vector<8x32xf32>
    %cst_80 = arith.constant dense<0.000000e+00> : vector<8xf32>
    %519 = vector.multi_reduction <add>, %518, %cst_80 [1] : vector<8x32xf32> to vector<8xf32>
    %520 = vector.shape_cast %519 : vector<8xf32> to vector<8x1xf32>
    %cst_81 = arith.constant dense<0.000000e+00> : vector<1xf32>
    %521 = vector.multi_reduction <add>, %520, %cst_81 [0] : vector<8x1xf32> to vector<1xf32>
    %522 = vector.shape_cast %521 : vector<1xf32> to vector<1x1xf32>
    %523 = arith.mulf %522, %511 : vector<1x1xf32>
    %524 = arith.mulf %503, %341 : vector<8x32xf32>
    %cst_82 = arith.constant dense<0.000000e+00> : vector<8xf32>
    %525 = vector.multi_reduction <add>, %524, %cst_82 [1] : vector<8x32xf32> to vector<8xf32>
    %526 = vector.shape_cast %525 : vector<8xf32> to vector<8x1xf32>
    %cst_83 = arith.constant dense<0.000000e+00> : vector<1xf32>
    %527 = vector.multi_reduction <add>, %526, %cst_83 [0] : vector<8x1xf32> to vector<1xf32>
    %528 = vector.shape_cast %527 : vector<1xf32> to vector<1x1xf32>
    %529 = arith.mulf %528, %511 : vector<1x1xf32>
    %530 = arith.mulf %503, %348 : vector<8x32xf32>
    %cst_84 = arith.constant dense<0.000000e+00> : vector<8xf32>
    %531 = vector.multi_reduction <add>, %530, %cst_84 [1] : vector<8x32xf32> to vector<8xf32>
    %532 = vector.shape_cast %531 : vector<8xf32> to vector<8x1xf32>
    %cst_85 = arith.constant dense<0.000000e+00> : vector<1xf32>
    %533 = vector.multi_reduction <add>, %532, %cst_85 [0] : vector<8x1xf32> to vector<1xf32>
    %534 = vector.shape_cast %533 : vector<1xf32> to vector<1x1xf32>
    %535 = arith.mulf %534, %511 : vector<1x1xf32>
    %536 = vector.broadcast %517 : vector<1x1xf32> to vector<8x32xf32>
    %537 = arith.subf %358, %536 : vector<8x32xf32>
    %538 = vector.broadcast %523 : vector<1x1xf32> to vector<8x32xf32>
    %539 = arith.subf %360, %538 : vector<8x32xf32>
    %540 = vector.broadcast %529 : vector<1x1xf32> to vector<8x32xf32>
    %541 = arith.subf %341, %540 : vector<8x32xf32>
    %542 = vector.broadcast %535 : vector<1x1xf32> to vector<8x32xf32>
    %543 = arith.subf %348, %542 : vector<8x32xf32>
    %544 = arith.mulf %503, %537 : vector<8x32xf32>
    %545 = arith.mulf %503, %539 : vector<8x32xf32>
    %546 = arith.mulf %544, %537 : vector<8x32xf32>
    %cst_86 = arith.constant dense<0.000000e+00> : vector<8xf32>
    %547 = vector.multi_reduction <add>, %546, %cst_86 [1] : vector<8x32xf32> to vector<8xf32>
    %548 = vector.shape_cast %547 : vector<8xf32> to vector<8x1xf32>
    %cst_87 = arith.constant dense<0.000000e+00> : vector<1xf32>
    %549 = vector.multi_reduction <add>, %548, %cst_87 [0] : vector<8x1xf32> to vector<1xf32>
    %550 = vector.shape_cast %549 : vector<1xf32> to vector<1x1xf32>
    %551 = arith.mulf %544, %539 : vector<8x32xf32>
    %cst_88 = arith.constant dense<0.000000e+00> : vector<8xf32>
    %552 = vector.multi_reduction <add>, %551, %cst_88 [1] : vector<8x32xf32> to vector<8xf32>
    %553 = vector.shape_cast %552 : vector<8xf32> to vector<8x1xf32>
    %cst_89 = arith.constant dense<0.000000e+00> : vector<1xf32>
    %554 = vector.multi_reduction <add>, %553, %cst_89 [0] : vector<8x1xf32> to vector<1xf32>
    %555 = vector.shape_cast %554 : vector<1xf32> to vector<1x1xf32>
    %556 = arith.mulf %545, %539 : vector<8x32xf32>
    %cst_90 = arith.constant dense<0.000000e+00> : vector<8xf32>
    %557 = vector.multi_reduction <add>, %556, %cst_90 [1] : vector<8x32xf32> to vector<8xf32>
    %558 = vector.shape_cast %557 : vector<8xf32> to vector<8x1xf32>
    %cst_91 = arith.constant dense<0.000000e+00> : vector<1xf32>
    %559 = vector.multi_reduction <add>, %558, %cst_91 [0] : vector<8x1xf32> to vector<1xf32>
    %560 = vector.shape_cast %559 : vector<1xf32> to vector<1x1xf32>
    %561 = arith.mulf %544, %541 : vector<8x32xf32>
    %cst_92 = arith.constant dense<0.000000e+00> : vector<8xf32>
    %562 = vector.multi_reduction <add>, %561, %cst_92 [1] : vector<8x32xf32> to vector<8xf32>
    %563 = vector.shape_cast %562 : vector<8xf32> to vector<8x1xf32>
    %cst_93 = arith.constant dense<0.000000e+00> : vector<1xf32>
    %564 = vector.multi_reduction <add>, %563, %cst_93 [0] : vector<8x1xf32> to vector<1xf32>
    %565 = vector.shape_cast %564 : vector<1xf32> to vector<1x1xf32>
    %566 = arith.mulf %544, %543 : vector<8x32xf32>
    %cst_94 = arith.constant dense<0.000000e+00> : vector<8xf32>
    %567 = vector.multi_reduction <add>, %566, %cst_94 [1] : vector<8x32xf32> to vector<8xf32>
    %568 = vector.shape_cast %567 : vector<8xf32> to vector<8x1xf32>
    %cst_95 = arith.constant dense<0.000000e+00> : vector<1xf32>
    %569 = vector.multi_reduction <add>, %568, %cst_95 [0] : vector<8x1xf32> to vector<1xf32>
    %570 = vector.shape_cast %569 : vector<1xf32> to vector<1x1xf32>
    %571 = arith.mulf %545, %541 : vector<8x32xf32>
    %cst_96 = arith.constant dense<0.000000e+00> : vector<8xf32>
    %572 = vector.multi_reduction <add>, %571, %cst_96 [1] : vector<8x32xf32> to vector<8xf32>
    %573 = vector.shape_cast %572 : vector<8xf32> to vector<8x1xf32>
    %cst_97 = arith.constant dense<0.000000e+00> : vector<1xf32>
    %574 = vector.multi_reduction <add>, %573, %cst_97 [0] : vector<8x1xf32> to vector<1xf32>
    %575 = vector.shape_cast %574 : vector<1xf32> to vector<1x1xf32>
    %576 = arith.mulf %545, %543 : vector<8x32xf32>
    %cst_98 = arith.constant dense<0.000000e+00> : vector<8xf32>
    %577 = vector.multi_reduction <add>, %576, %cst_98 [1] : vector<8x32xf32> to vector<8xf32>
    %578 = vector.shape_cast %577 : vector<8xf32> to vector<8x1xf32>
    %cst_99 = arith.constant dense<0.000000e+00> : vector<1xf32>
    %579 = vector.multi_reduction <add>, %578, %cst_99 [0] : vector<8x1xf32> to vector<1xf32>
    %580 = vector.shape_cast %579 : vector<1xf32> to vector<1x1xf32>
    %581 = arith.mulf %550, %560 : vector<1x1xf32>
    %582 = arith.mulf %555, %555 : vector<1x1xf32>
    %583 = arith.subf %581, %582 : vector<1x1xf32>
    %cst_100 = arith.constant 0.000000e+00 : f32
    %584 = vector.broadcast %cst_100 : f32 to vector<1x1xf32>
    %585 = arith.cmpf ogt, %583, %584 : vector<1x1xf32>
    %cst_101 = arith.constant 1.000000e+00 : f32
    %586 = vector.broadcast %cst_101 : f32 to vector<1x1xf32>
    %587 = arith.select %585, %583, %586 : vector<1x1xi1>, vector<1x1xf32>
    %cst_102 = arith.constant 1.000000e+00 : f32
    %588 = vector.broadcast %cst_102 : f32 to vector<1x1xf32>
    %589 = arith.divf %588, %587 : vector<1x1xf32>
    %590 = arith.mulf %560, %565 : vector<1x1xf32>
    %591 = arith.mulf %555, %575 : vector<1x1xf32>
    %592 = arith.subf %590, %591 : vector<1x1xf32>
    %593 = arith.mulf %592, %589 : vector<1x1xf32>
    %594 = arith.mulf %550, %575 : vector<1x1xf32>
    %595 = arith.mulf %555, %565 : vector<1x1xf32>
    %596 = arith.subf %594, %595 : vector<1x1xf32>
    %597 = arith.mulf %596, %589 : vector<1x1xf32>
    %598 = arith.mulf %560, %570 : vector<1x1xf32>
    %599 = arith.mulf %555, %580 : vector<1x1xf32>
    %600 = arith.subf %598, %599 : vector<1x1xf32>
    %601 = arith.mulf %600, %589 : vector<1x1xf32>
    %602 = arith.mulf %550, %580 : vector<1x1xf32>
    %603 = arith.mulf %555, %570 : vector<1x1xf32>
    %604 = arith.subf %602, %603 : vector<1x1xf32>
    %605 = arith.mulf %604, %589 : vector<1x1xf32>
    %606 = vector.broadcast %593 : vector<1x1xf32> to vector<8x32xf32>
    %607 = arith.mulf %537, %606 : vector<8x32xf32>
    %608 = vector.broadcast %597 : vector<1x1xf32> to vector<8x32xf32>
    %609 = arith.mulf %539, %608 : vector<8x32xf32>
    %610 = arith.addf %607, %609 : vector<8x32xf32>
    %611 = vector.broadcast %529 : vector<1x1xf32> to vector<8x32xf32>
    %612 = arith.addf %610, %611 : vector<8x32xf32>
    %613 = vector.broadcast %601 : vector<1x1xf32> to vector<8x32xf32>
    %614 = arith.mulf %537, %613 : vector<8x32xf32>
    %615 = vector.broadcast %605 : vector<1x1xf32> to vector<8x32xf32>
    %616 = arith.mulf %539, %615 : vector<8x32xf32>
    %617 = arith.addf %614, %616 : vector<8x32xf32>
    %618 = vector.broadcast %535 : vector<1x1xf32> to vector<8x32xf32>
    %619 = arith.addf %617, %618 : vector<8x32xf32>
    %620 = arith.subf %612, %358 : vector<8x32xf32>
    %621 = arith.mulf %620, %620 : vector<8x32xf32>
    %622 = arith.subf %619, %360 : vector<8x32xf32>
    %623 = arith.mulf %622, %622 : vector<8x32xf32>
    %624 = arith.addf %621, %623 : vector<8x32xf32>
    %625 = math.sqrt %624 : vector<8x32xf32>
    %626 = arith.mulf %503, %625 : vector<8x32xf32>
    %cst_103 = arith.constant dense<0.000000e+00> : vector<8xf32>
    %627 = vector.multi_reduction <add>, %626, %cst_103 [1] : vector<8x32xf32> to vector<8xf32>
    %628 = vector.shape_cast %627 : vector<8xf32> to vector<8x1xf32>
    %cst_104 = arith.constant dense<0.000000e+00> : vector<1xf32>
    %629 = vector.multi_reduction <add>, %628, %cst_104 [0] : vector<8x1xf32> to vector<1xf32>
    %630 = vector.shape_cast %629 : vector<1xf32> to vector<1x1xf32>
    %631 = arith.mulf %630, %511 : vector<1x1xf32>
    %cst_105 = arith.constant 1.000000e+01 : f32
    %632 = vector.broadcast %cst_105 : f32 to vector<1x1xf32>
    %633 = arith.mulf %450, %632 : vector<1x1xf32>
    %634 = arith.addf %443, %633 : vector<1x1xf32>
    %635 = arith.addf %634, %457 : vector<1x1xf32>
    %636 = arith.addf %635, %475 : vector<1x1xf32>
    %637 = arith.addf %636, %631 : vector<1x1xf32>
    %638 = vector.extract %637[0, 0] : f32 from vector<1x1xf32>
    %c0_106 = arith.constant 0 : index
    %639 = memref.load %arg2[%c0_106] : memref<6xf32, #tpu.memory_space<smem>>
    memref.store %638, %arg2[%c0_106] : memref<6xf32, #tpu.memory_space<smem>>
    %640 = vector.extract %443[0, 0] : f32 from vector<1x1xf32>
    %c1_107 = arith.constant 1 : index
    %641 = memref.load %arg2[%c1_107] : memref<6xf32, #tpu.memory_space<smem>>
    memref.store %640, %arg2[%c1_107] : memref<6xf32, #tpu.memory_space<smem>>
    %642 = vector.extract %450[0, 0] : f32 from vector<1x1xf32>
    %c2_108 = arith.constant 2 : index
    %643 = memref.load %arg2[%c2_108] : memref<6xf32, #tpu.memory_space<smem>>
    memref.store %642, %arg2[%c2_108] : memref<6xf32, #tpu.memory_space<smem>>
    %644 = vector.extract %457[0, 0] : f32 from vector<1x1xf32>
    %c3_109 = arith.constant 3 : index
    %645 = memref.load %arg2[%c3_109] : memref<6xf32, #tpu.memory_space<smem>>
    memref.store %644, %arg2[%c3_109] : memref<6xf32, #tpu.memory_space<smem>>
    %646 = vector.extract %475[0, 0] : f32 from vector<1x1xf32>
    %c4_110 = arith.constant 4 : index
    %647 = memref.load %arg2[%c4_110] : memref<6xf32, #tpu.memory_space<smem>>
    memref.store %646, %arg2[%c4_110] : memref<6xf32, #tpu.memory_space<smem>>
    %648 = vector.extract %631[0, 0] : f32 from vector<1x1xf32>
    %c5_111 = arith.constant 5 : index
    %649 = memref.load %arg2[%c5_111] : memref<6xf32, #tpu.memory_space<smem>>
    memref.store %648, %arg2[%c5_111] : memref<6xf32, #tpu.memory_space<smem>>
    return
  }
}

</mosaic_0001>

<llo_original>
// kernel: squeeze.32
$region0: #{squeeze.32}
  %s0 = inlined_call_operand.vmem [shape: f32[256], index: 0, kind: input, shape index: {}]
  %s1 = inlined_call_operand.vmem [shape: f32[1,8,32], index: 1, kind: output, shape index: {}]
  $region1: #{squeeze.32} parent=0
    #allocation0 [shape = 'u8[4096]{0}', space=vmem, size = 0x1000, scoped, tag = 'scoped mem for input reshape']
    %s3 = sshllo.u32 0, 2
    %v4 = vld [vmem:[%s0] sm:%s3]
    %5 = vst [vmem:[#allocation0] sm:%s3] %v4
    %v6 = vld [vmem:[#allocation0] sm:$0x3]
    %vm7 = vcmask 261120
    %8 = vst.msk [vmem:[%s1] ss:$4 sm:$0x3] %vm7, %v6
    %v9 = vld [vmem:[#allocation0] sm:$0x3]
    %10 = vrot.lane.b32.xlu0 %v9, 96
    %v11 = vpop.permute.xlu0 %10
    %vm12 = vcmask 261120
    %s13 = scalar_lea.vmem %s1, 1
    %14 = vst.msk [vmem:[%s13] ss:$4 sm:$0x3] %vm12, %v11
    %v15 = vld [vmem:[#allocation0] sm:$0x3]
    %16 = vrot.lane.b32.xlu0 %v15, 64
    %v17 = vpop.permute.xlu0 %16
    %vm18 = vcmask 261120
    %s19 = scalar_lea.vmem %s1, 2
    %20 = vst.msk [vmem:[%s19] ss:$4 sm:$0x3] %vm18, %v17
    %v21 = vld [vmem:[#allocation0] sm:$0x3]
    %22 = vrot.lane.b32.xlu0 %v21, 32
    %v23 = vpop.permute.xlu0 %22
    %vm24 = vcmask 261120
    %s25 = scalar_lea.vmem %s1, 3
    %26 = vst.msk [vmem:[%s25] ss:$4 sm:$0x3] %vm24, %v23

// kernel: criterion_train_grid.1
$region0: #{criterion_train_grid.1}
  #allocation0 [shape = 'u32[]', space=smem, size = 0x4, offset = 0x4, fixed_abs, tag = 'smem constant byte address 0x4 - core index']
  #allocation1 [shape = 'u32[144,128]{1,0:T(1,128)}', space=vmem, size = 0x12000, scoped, tag = 'internal scratch']
  %s0 = inlined_call_operand.vmem [shape: f32[91], index: 0, kind: input, shape index: {}]
  %s1 = inlined_call_operand.vmem [shape: f32[12,8,32], index: 1, kind: input, shape index: {}]
  %s2 = inlined_call_operand.vmem [shape: f32[6], index: 2, kind: output, shape index: {}]
  %s3 = sld [smem:[#allocation0]]
  $region22: #{criterion_train_grid.1} parent=0
    _
  %s5 = ssub.s32 1, %s3
  %s6 = scalar_select 0, %s5, %s3
  $region1: #{criterion_train_grid.1} parent=0
    #allocation2 [shape = 'u8[512]{0}', space=smem, size = 0x200, scoped, tag = 'input window, operand 0, single buffered']
    #allocation3 [shape = 's32[1]{0}', space=sflag, size = 0x4, scoped, tag = 'scoped memory for criterion_train_grid.1']
    #allocation4 [shape = 's32[1]{0}', space=sflag, size = 0x4, scoped, tag = 'scoped memory for criterion_train_grid.1']
    #allocation5 [shape = 'u8[512]{0}', space=smem, size = 0x200, scoped, tag = 'output window, operand 0, single buffered']
    %7 = vsyncpa [#allocation3], 0
    %8 = vsyncpa [#allocation4], 0
    // Predicated region
    $region2: #{criterion_train_grid.1} parent=1 // pred_check
      _
    $region3: #{criterion_train_grid.1} parent=1 // pred_check_branch
      %10 = sbr.rel (0) target = $region5
    $region4: #{criterion_train_grid.1} parent=1 // pred_region
      %s12 = ssub.s32 16, 16
      %13 = vsyncadd [#allocation3], %s12
      %s15 = sshll.u32 %s0, 4
      %s16 = int_to_ptr.vmem [resolvable:$true] %s15
      %18 = dma.vmem_to_smem %s16, 16, [#allocation2], [#allocation3]
    $region5: #{criterion_train_grid.1} parent=1 // pred_fallthru
      _
    // Predicated region
    $region6: #{criterion_train_grid.1} parent=1 // pred_check
      _
    $region7: #{criterion_train_grid.1} parent=1 // pred_check_branch
      %20 = sbr.rel (0) target = $region9
    $region8: #{criterion_train_grid.1} parent=1 // pred_region
      _
    $region9: #{criterion_train_grid.1} parent=1 // pred_fallthru
      _
    // Predicated region
    $region10: #{criterion_train_grid.1} parent=1 // pred_check
      _
    $region11: #{criterion_train_grid.1} parent=1 // pred_check_branch
      %22 = sbr.rel (0) target = $region13
    $region12: #{criterion_train_grid.1} parent=1 // pred_region
      %23 = dma.done [#allocation3], 16
    $region13: #{criterion_train_grid.1} parent=1 // pred_fallthru
      _
    %24 = sfence
    %s25 = sld [smem:[#allocation2]]
    %s26 = scalar_lea.vmem %s1, 72
    %v27 = vld [vmem:[%s26] sm:$0xff]
    %s28 = scalar_lea.vmem %s1, 80
    %v29 = vld [vmem:[%s28] sm:$0xff]
    %s30 = scalar_lea.vmem %s1, 88
    %v31 = vld [vmem:[%s30] sm:$0xff]
    %v32 = vmul.f32 %v27, %v29
    %v33 = vmul.f32 %v27, %v31
    %v34 = vmul.f32 %v29, %v31
    %v35 = vmul.f32 %v27, %v27
    %v36 = vmul.f32 %v29, %v29
    %v37 = vmul.f32 %v31, %v31
    %s38 = sld [smem:[#allocation2 + $0xb]]
    %s39 = sld [smem:[#allocation2 + $0xc]]
    %v40 = vstv %s39
    %v41 = vmul.f32 %v29, %v40
    %v42 = vstv %s38
    %v43 = vadd.f32 %v42, %v41
    %s44 = sld [smem:[#allocation2 + $0x1f]]
    %s45 = sld [smem:[#allocation2 + $0x20]]
    %v46 = vstv %s45
    %v47 = vmul.f32 %v29, %v46
    %v48 = vstv %s44
    %v49 = vadd.f32 %v48, %v47
    %s50 = sld [smem:[#allocation2 + $0x33]]
    %s51 = sld [smem:[#allocation2 + $0x34]]
    %v52 = vstv %s51
    %v53 = vmul.f32 %v29, %v52
    %v54 = vstv %s50
    %v55 = vadd.f32 %v54, %v53
    %s56 = sld [smem:[#allocation2 + $0x47]]
    %s57 = sld [smem:[#allocation2 + $0x48]]
    %v58 = vstv %s57
    %v59 = vmul.f32 %v29, %v58
    %v60 = vstv %s56
    %v61 = vadd.f32 %v60, %v59
    %s62 = sld [smem:[#allocation2 + $0xd]]
    %v63 = vstv %s62
    %v64 = vmul.f32 %v27, %v63
    %v65 = vadd.f32 %v43, %v64
    %s66 = sld [smem:[#allocation2 + $0x21]]
    %v67 = vstv %s66
    %v68 = vmul.f32 %v27, %v67
    %v69 = vadd.f32 %v49, %v68
    %s70 = sld [smem:[#allocation2 + $0x35]]
    %v71 = vstv %s70
    %v72 = vmul.f32 %v27, %v71
    %v73 = vadd.f32 %v55, %v72
    %s74 = sld [smem:[#allocation2 + $0x49]]
    %v75 = vstv %s74
    %v76 = vmul.f32 %v27, %v75
    %v77 = vadd.f32 %v61, %v76
    %s78 = sld [smem:[#allocation2 + $0xe]]
    %v79 = vstv %s78
    %v80 = vmul.f32 %v31, %v79
    %v81 = vadd.f32 %v65, %v80
    %s82 = sld [smem:[#allocation2 + $0x22]]
    %v83 = vstv %s82
    %v84 = vmul.f32 %v31, %v83
    %v85 = vadd.f32 %v69, %v84
    %s86 = sld [smem:[#allocation2 + $0x36]]
    %v87 = vstv %s86
    %v88 = vmul.f32 %v31, %v87
    %v89 = vadd.f32 %v73, %v88
    %s90 = sld [smem:[#allocation2 + $0x4a]]
    %v91 = vstv %s90
    %v92 = vmul.f32 %v31, %v91
    %v93 = vadd.f32 %v77, %v92
    %s94 = sld [smem:[#allocation2 + $0xf]]
    %v95 = vstv %s94
    %v96 = vmul.f32 %v32, %v95
    %v97 = vadd.f32 %v81, %v96
    %s98 = sld [smem:[#allocation2 + $0x23]]
    %v99 = vstv %s98
    %v100 = vmul.f32 %v32, %v99
    %v101 = vadd.f32 %v85, %v100
    %s102 = sld [smem:[#allocation2 + $0x37]]
    %v103 = vstv %s102
    %v104 = vmul.f32 %v32, %v103
    %v105 = vadd.f32 %v89, %v104
    %s106 = sld [smem:[#allocation2 + $0x4b]]
    %v107 = vstv %s106
    %v108 = vmul.f32 %v32, %v107
    %v109 = vadd.f32 %v93, %v108
    %s110 = sld [smem:[#allocation2 + $0x10]]
    %v111 = vstv %s110
    %v112 = vmul.f32 %v34, %v111
    %v113 = vadd.f32 %v97, %v112
    %s114 = sld [smem:[#allocation2 + $0x24]]
    %v115 = vstv %s114
    %v116 = vmul.f32 %v34, %v115
    %v117 = vadd.f32 %v101, %v116
    %s118 = sld [smem:[#allocation2 + $0x38]]
    %v119 = vstv %s118
    %v120 = vmul.f32 %v34, %v119
    %v121 = vadd.f32 %v105, %v120
    %s122 = sld [smem:[#allocation2 + $0x4c]]
    %v123 = vstv %s122
    %v124 = vmul.f32 %v34, %v123
    %v125 = vadd.f32 %v109, %v124
    %s126 = sld [smem:[#allocation2 + $0x11]]
    %v127 = vstv %s126
    %v128 = vmul.f32 %v33, %v127
    %v129 = vadd.f32 %v113, %v128
    %s130 = sld [smem:[#allocation2 + $0x25]]
    %v131 = vstv %s130
    %v132 = vmul.f32 %v33, %v131
    %v133 = vadd.f32 %v117, %v132
    %s134 = sld [smem:[#allocation2 + $0x39]]
    %v135 = vstv %s134
    %v136 = vmul.f32 %v33, %v135
    %v137 = vadd.f32 %v121, %v136
    %s138 = sld [smem:[#allocation2 + $0x4d]]
    %v139 = vstv %s138
    %v140 = vmul.f32 %v33, %v139
    %v141 = vadd.f32 %v125, %v140
    %s142 = sld [smem:[#allocation2 + $0x12]]
    %v143 = vstv %s142
    %v144 = vmul.f32 %v36, %v143
    %v145 = vadd.f32 %v129, %v144
    %s146 = sld [smem:[#allocation2 + $0x26]]
    %v147 = vstv %s146
    %v148 = vmul.f32 %v36, %v147
    %v149 = vadd.f32 %v133, %v148
    %s150 = sld [smem:[#allocation2 + $0x3a]]
    %v151 = vstv %s150
    %v152 = vmul.f32 %v36, %v151
    %v153 = vadd.f32 %v137, %v152
    %s154 = sld [smem:[#allocation2 + $0x4e]]
    %v155 = vstv %s154
    %v156 = vmul.f32 %v36, %v155
    %v157 = vadd.f32 %v141, %v156
    %s158 = sld [smem:[#allocation2 + $0x13]]
    %v159 = vstv %s158
    %v160 = vmul.f32 %v35, %v159
    %v161 = vadd.f32 %v145, %v160
    %s162 = sld [smem:[#allocation2 + $0x27]]
    %v163 = vstv %s162
    %v164 = vmul.f32 %v35, %v163
    %v165 = vadd.f32 %v149, %v164
    %s166 = sld [smem:[#allocation2 + $0x3b]]
    %v167 = vstv %s166
    %v168 = vmul.f32 %v35, %v167
    %v169 = vadd.f32 %v153, %v168
    %s170 = sld [smem:[#allocation2 + $0x4f]]
    %v171 = vstv %s170
    %v172 = vmul.f32 %v35, %v171
    %v173 = vadd.f32 %v157, %v172
    %s174 = sld [smem:[#allocation2 + $0x14]]
    %v175 = vstv %s174
    %v176 = vmul.f32 %v37, %v175
    %v177 = vadd.f32 %v161, %v176
    %s178 = sld [smem:[#allocation2 + $0x28]]
    %v179 = vstv %s178
    %v180 = vmul.f32 %v37, %v179
    %v181 = vadd.f32 %v165, %v180
    %s182 = sld [smem:[#allocation2 + $0x3c]]
    %v183 = vstv %s182
    %v184 = vmul.f32 %v37, %v183
    %v185 = vadd.f32 %v169, %v184
    %s186 = sld [smem:[#allocation2 + $0x50]]
    %v187 = vstv %s186
    %v188 = vmul.f32 %v37, %v187
    %v189 = vadd.f32 %v173, %v188
    %v190 = vmul.f32 %v32, %v31
    %s191 = sld [smem:[#allocation2 + $0x15]]
    %v192 = vstv %s191
    %v193 = vmul.f32 %v190, %v192
    %v194 = vadd.f32 %v177, %v193
    %s195 = sld [smem:[#allocation2 + $0x29]]
    %v196 = vstv %s195
    %v197 = vmul.f32 %v190, %v196
    %v198 = vadd.f32 %v181, %v197
    %s199 = sld [smem:[#allocation2 + $0x3d]]
    %v200 = vstv %s199
    %v201 = vmul.f32 %v190, %v200
    %v202 = vadd.f32 %v185, %v201
    %s203 = sld [smem:[#allocation2 + $0x51]]
    %v204 = vstv %s203
    %v205 = vmul.f32 %v190, %v204
    %v206 = vadd.f32 %v189, %v205
    %v207 = vmul.f32 %v36, %v29
    %s208 = sld [smem:[#allocation2 + $0x16]]
    %v209 = vstv %s208
    %v210 = vmul.f32 %v207, %v209
    %v211 = vadd.f32 %v194, %v210
    %s212 = sld [smem:[#allocation2 + $0x2a]]
    %v213 = vstv %s212
    %v214 = vmul.f32 %v207, %v213
    %v215 = vadd.f32 %v198, %v214
    %s216 = sld [smem:[#allocation2 + $0x3e]]
    %v217 = vstv %s216
    %v218 = vmul.f32 %v207, %v217
    %v219 = vadd.f32 %v202, %v218
    %s220 = sld [smem:[#allocation2 + $0x52]]
    %v221 = vstv %s220
    %v222 = vmul.f32 %v207, %v221
    %v223 = vadd.f32 %v206, %v222
    %v224 = vmul.f32 %v29, %v35
    %s225 = sld [smem:[#allocation2 + $0x17]]
    %v226 = vstv %s225
    %v227 = vmul.f32 %v224, %v226
    %v228 = vadd.f32 %v211, %v227
    %s229 = sld [smem:[#allocation2 + $0x2b]]
    %v230 = vstv %s229
    %v231 = vmul.f32 %v224, %v230
    %v232 = vadd.f32 %v215, %v231
    %s233 = sld [smem:[#allocation2 + $0x3f]]
    %v234 = vstv %s233
    %v235 = vmul.f32 %v224, %v234
    %v236 = vadd.f32 %v219, %v235
    %s237 = sld [smem:[#allocation2 + $0x53]]
    %v238 = vstv %s237
    %v239 = vmul.f32 %v224, %v238
    %v240 = vadd.f32 %v223, %v239
    %v241 = vmul.f32 %v29, %v37
    %s242 = sld [smem:[#allocation2 + $0x18]]
    %v243 = vstv %s242
    %v244 = vmul.f32 %v241, %v243
    %v245 = vadd.f32 %v228, %v244
    %s246 = sld [smem:[#allocation2 + $0x2c]]
    %v247 = vstv %s246
    %v248 = vmul.f32 %v241, %v247
    %v249 = vadd.f32 %v232, %v248
    %s250 = sld [smem:[#allocation2 + $0x40]]
    %v251 = vstv %s250
    %v252 = vmul.f32 %v241, %v251
    %v253 = vadd.f32 %v236, %v252
    %s254 = sld [smem:[#allocation2 + $0x54]]
    %v255 = vstv %s254
    %v256 = vmul.f32 %v241, %v255
    %v257 = vadd.f32 %v240, %v256
    %v258 = vmul.f32 %v36, %v27
    %s259 = sld [smem:[#allocation2 + $0x19]]
    %v260 = vstv %s259
    %v261 = vmul.f32 %v258, %v260
    %v262 = vadd.f32 %v245, %v261
    %s263 = sld [smem:[#allocation2 + $0x2d]]
    %v264 = vstv %s263
    %v265 = vmul.f32 %v258, %v264
    %v266 = vadd.f32 %v249, %v265
    %s267 = sld [smem:[#allocation2 + $0x41]]
    %v268 = vstv %s267
    %v269 = vmul.f32 %v258, %v268
    %v270 = vadd.f32 %v253, %v269
    %s271 = sld [smem:[#allocation2 + $0x55]]
    %v272 = vstv %s271
    %v273 = vmul.f32 %v258, %v272
    %v274 = vadd.f32 %v257, %v273
    %v275 = vmul.f32 %v35, %v27
    %s276 = sld [smem:[#allocation2 + $0x1a]]
    %v277 = vstv %s276
    %v278 = vmul.f32 %v275, %v277
    %v279 = vadd.f32 %v262, %v278
    %s280 = sld [smem:[#allocation2 + $0x2e]]
    %v281 = vstv %s280
    %v282 = vmul.f32 %v275, %v281
    %v283 = vadd.f32 %v266, %v282
    %s284 = sld [smem:[#allocation2 + $0x42]]
    %v285 = vstv %s284
    %v286 = vmul.f32 %v275, %v285
    %v287 = vadd.f32 %v270, %v286
    %s288 = sld [smem:[#allocation2 + $0x56]]
    %v289 = vstv %s288
    %v290 = vmul.f32 %v275, %v289
    %v291 = vadd.f32 %v274, %v290
    %v292 = vmul.f32 %v27, %v37
    %s293 = sld [smem:[#allocation2 + $0x1b]]
    %v294 = vstv %s293
    %v295 = vmul.f32 %v292, %v294
    %v296 = vadd.f32 %v279, %v295
    %s297 = sld [smem:[#allocation2 + $0x2f]]
    %v298 = vstv %s297
    %v299 = vmul.f32 %v292, %v298
    %v300 = vadd.f32 %v283, %v299
    %s301 = sld [smem:[#allocation2 + $0x43]]
    %v302 = vstv %s301
    %v303 = vmul.f32 %v292, %v302
    %v304 = vadd.f32 %v287, %v303
    %s305 = sld [smem:[#allocation2 + $0x57]]
    %v306 = vstv %s305
    %v307 = vmul.f32 %v292, %v306
    %v308 = vadd.f32 %v291, %v307
    %v309 = vmul.f32 %v36, %v31
    %s310 = sld [smem:[#allocation2 + $0x1c]]
    %v311 = vstv %s310
    %v312 = vmul.f32 %v309, %v311
    %v313 = vadd.f32 %v296, %v312
    %s314 = sld [smem:[#allocation2 + $0x30]]
    %v315 = vstv %s314
    %v316 = vmul.f32 %v309, %v315
    %v317 = vadd.f32 %v300, %v316
    %s318 = sld [smem:[#allocation2 + $0x44]]
    %v319 = vstv %s318
    %v320 = vmul.f32 %v309, %v319
    %v321 = vadd.f32 %v304, %v320
    %s322 = sld [smem:[#allocation2 + $0x58]]
    %v323 = vstv %s322
    %v324 = vmul.f32 %v309, %v323
    %v325 = vadd.f32 %v308, %v324
    %v326 = vmul.f32 %v35, %v31
    %s327 = sld [smem:[#allocation2 + $0x1d]]
    %v328 = vstv %s327
    %v329 = vmul.f32 %v326, %v328
    %v330 = vadd.f32 %v313, %v329
    %s331 = sld [smem:[#allocation2 + $0x31]]
    %v332 = vstv %s331
    %v333 = vmul.f32 %v326, %v332
    %v334 = vadd.f32 %v317, %v333
    %s335 = sld [smem:[#allocation2 + $0x45]]
    %v336 = vstv %s335
    %v337 = vmul.f32 %v326, %v336
    %v338 = vadd.f32 %v321, %v337
    %s339 = sld [smem:[#allocation2 + $0x59]]
    %v340 = vstv %s339
    %v341 = vmul.f32 %v326, %v340
    %v342 = vadd.f32 %v325, %v341
    %v343 = vmul.f32 %v37, %v31
    %s344 = sld [smem:[#allocation2 + $0x1e]]
    %v345 = vstv %s344
    %v346 = vmul.f32 %v343, %v345
    %v347 = vadd.f32 %v330, %v346
    %s348 = sld [smem:[#allocation2 + $0x32]]
    %v349 = vstv %s348
    %v350 = vmul.f32 %v343, %v349
    %v351 = vadd.f32 %v334, %v350
    %s352 = sld [smem:[#allocation2 + $0x46]]
    %v353 = vstv %s352
    %v354 = vmul.f32 %v343, %v353
    %v355 = vadd.f32 %v338, %v354
    %s356 = sld [smem:[#allocation2 + $0x5a]]
    %v357 = vstv %s356
    %v358 = vmul.f32 %v343, %v357
    %v359 = vadd.f32 %v342, %v358
    %v360 = vrcp.pop %v351
    %v361 = vmul.f32 %v347, %v360
    %s362 = sld [smem:[#allocation2 + $0x8]]
    %v363 = vstv %s362
    %v364 = vmul.f32 %v361, %v363
    %s365 = sld [smem:[#allocation2 + $0x7]]
    %v366 = vstv %s365
    %v367 = vadd.f32 %v364, %v366
    %v368 = vrcp.pop %v359
    %v369 = vmul.f32 %v355, %v368
    %s370 = sld [smem:[#allocation2 + $0xa]]
    %v371 = vstv %s370
    %v372 = vmul.f32 %v369, %v371
    %s373 = sld [smem:[#allocation2 + $0x9]]
    %v374 = vstv %s373
    %v375 = vadd.f32 %v372, %v374
    %v376 = vld [vmem:[%s1] sm:$0xff]
    %s377 = scalar_lea.vmem %s1, 8
    %v378 = vld [vmem:[%s377] sm:$0xff]
    %s379 = scalar_lea.vmem %s1, 16
    %v380 = vld [vmem:[%s379] sm:$0xff]
    %s381 = scalar_lea.vmem %s1, 24
    %v382 = vld [vmem:[%s381] sm:$0xff]
    %s383 = scalar_lea.vmem %s1, 32
    %v384 = vld [vmem:[%s383] sm:$0xff]
    %s385 = scalar_lea.vmem %s1, 40
    %v386 = vld [vmem:[%s385] sm:$0xff]
    %s387 = scalar_lea.vmem %s1, 48
    %v388 = vld [vmem:[%s387] sm:$0xff]
    %s389 = scalar_lea.vmem %s1, 56
    %v390 = vld [vmem:[%s389] sm:$0xff]
    %s391 = scalar_lea.vmem %s1, 64
    %v392 = vld [vmem:[%s391] sm:$0xff]
    %s393 = smul.f32 %s25, 0.4
    %s394 = sadd.f32 %s393, 0.5
    %s395 = ssub.f32 0.5, %s393
    %vm396 = vcmp.gt.f32.partialorder %v382, 0.5
    %vm397 = vcmp.lt.f32.partialorder %v382, 0.5
    %v398 = vstv %s395
    %v399 = vsel %vm397, %v398, %v382
    %v400 = vstv %s394
    %v401 = vsel %vm396, %v400, %v399
    %v402 = vsub.f32 %v367, %v384
    %v403 = vsub.f32 %v375, %v386
    %v404 = vsub.f32 %v376, %v388
    %v405 = vmul.f32 %v404, %v404
    %v406 = vsub.f32 %v378, %v390
    %v407 = vmul.f32 %v406, %v406
    %v408 = vadd.f32 %v405, %v407
    %v409 = vrsqrt.pop %v408
    %v410 = vmul.f32 %v408, %v409
    %vm411 = vcmp.eq.f32.partialorder %v408, inf
    %v412 = vsel %vm411, %v408, %v410
    %vm413 = vcmp.eq.f32.partialorder %v408, 0.0
    %v414 = vand.u32 %v408, 2147483648
    %v415 = vsel %vm413, %v414, %v412
    %v416 = vsub.f32 %v380, %v392
    %v417 = vand.u32 2147483647, %v416
    %v418 = vmul.f32 %v402, %v402
    %v419 = vmul.f32 %v403, %v403
    %v420 = vadd.f32 %v418, %v419
    %v421 = vrsqrt.pop %v420
    %v422 = vmul.f32 %v420, %v421
    %vm423 = vcmp.eq.f32.partialorder %v420, inf
    %v424 = vsel %vm423, %v420, %v422
    %vm425 = vcmp.eq.f32.partialorder %v420, 0.0
    %v426 = vand.u32 %v420, 2147483648
    %v427 = vsel %vm425, %v426, %v424
    %vm428 = vcmask 261120
    %v429 = vsel %vm428, %v401, 0.0
    %430 = vadd.xlane.f32.xlu0 %v429
    %v431 = vpop.xlane.xlu0 %430
    %v432 = vrot.slane %v431, 4
    %v433 = vadd.f32 %v431, %v432
    %v434 = vrot.slane %v433, 2
    %v435 = vadd.f32 %v433, %v434
    %v436 = vrot.slane %v435, 1
    %v437 = vadd.f32 %v435, %v436
    %v438 = vmul.f32 %v437, 0.00390625
    %v439 = vsel %vm428, %v367, 0.0
    %440 = vadd.xlane.f32.xlu0 %v439
    %v441 = vpop.xlane.xlu0 %440
    %v442 = vrot.slane %v441, 4
    %v443 = vadd.f32 %v441, %v442
    %v444 = vrot.slane %v443, 2
    %v445 = vadd.f32 %v443, %v444
    %v446 = vrot.slane %v445, 1
    %v447 = vadd.f32 %v445, %v446
    %v448 = vsel %vm428, %v384, 0.0
    %449 = vadd.xlane.f32.xlu0 %v448
    %v450 = vpop.xlane.xlu0 %449
    %v451 = vrot.slane %v450, 4
    %v452 = vadd.f32 %v450, %v451
    %v453 = vrot.slane %v452, 2
    %v454 = vadd.f32 %v452, %v453
    %v455 = vrot.slane %v454, 1
    %v456 = vadd.f32 %v454, %v455
    %v457 = vsub.f32 %v447, %v456
    %v458 = vmul.f32 %v457, 0.00390625
    %v459 = vsel %vm428, %v375, 0.0
    %460 = vadd.xlane.f32.xlu0 %v459
    %v461 = vpop.xlane.xlu0 %460
    %v462 = vrot.slane %v461, 4
    %v463 = vadd.f32 %v461, %v462
    %v464 = vrot.slane %v463, 2
    %v465 = vadd.f32 %v463, %v464
    %v466 = vrot.slane %v465, 1
    %v467 = vadd.f32 %v465, %v466
    %v468 = vsel %vm428, %v386, 0.0
    %469 = vadd.xlane.f32.xlu0 %v468
    %v470 = vpop.xlane.xlu0 %469
    %v471 = vrot.slane %v470, 4
    %v472 = vadd.f32 %v470, %v471
    %v473 = vrot.slane %v472, 2
    %v474 = vadd.f32 %v472, %v473
    %v475 = vrot.slane %v474, 1
    %v476 = vadd.f32 %v474, %v475
    %v477 = vsub.f32 %v467, %v476
    %v478 = vmul.f32 %v477, 0.00390625
    %v479 = vsub.f32 %v401, %v438
    %v480 = vadd.f32 %v479, 1.0
    %v481 = vmax.f32 %v480, 0.0
    %v482 = vadd.f32 %v384, %v458
    %v483 = vsub.f32 %v482, %v367
    %v484 = vadd.f32 %v386, %v478
    %v485 = vsub.f32 %v484, %v375
    %v486 = vmul.f32 %v483, %v483
    %v487 = vmul.f32 %v485, %v485
    %v488 = vadd.f32 %v486, %v487
    %v489 = vrsqrt.pop %v488
    %v490 = vmul.f32 %v488, %v489
    %vm491 = vcmp.eq.f32.partialorder %v488, inf
    %v492 = vsel %vm491, %v488, %v490
    %vm493 = vcmp.eq.f32.partialorder %v488, 0.0
    %v494 = vand.u32 %v488, 2147483648
    %v495 = vsel %vm493, %v494, %v492
    %v496 = vmul.f32 %v415, %v481
    %v497 = vsel %vm428, %v496, 0.0
    %498 = vadd.xlane.f32.xlu0 %v497
    %v499 = vpop.xlane.xlu0 %498
    %v500 = vrot.slane %v499, 4
    %v501 = vadd.f32 %v499, %v500
    %v502 = vrot.slane %v501, 2
    %v503 = vadd.f32 %v501, %v502
    %v504 = vrot.slane %v503, 1
    %v505 = vadd.f32 %v503, %v504
    %v506 = vmul.f32 %v505, 0.00390625
    %v507 = vmul.f32 %v417, %v481
    %v508 = vsel %vm428, %v507, 0.0
    %509 = vadd.xlane.f32.xlu0 %v508
    %v510 = vpop.xlane.xlu0 %509
    %v511 = vrot.slane %v510, 4
    %v512 = vadd.f32 %v510, %v511
    %v513 = vrot.slane %v512, 2
    %v514 = vadd.f32 %v512, %v513
    %v515 = vrot.slane %v514, 1
    %v516 = vadd.f32 %v514, %v515
    %v517 = vmul.f32 %v516, 0.00390625
    %v518 = vmul.f32 %v427, %v481
    %v519 = vsel %vm428, %v518, 0.0
    %520 = vadd.xlane.f32.xlu0 %v519
    %v521 = vpop.xlane.xlu0 %520
    %v522 = vrot.slane %v521, 4
    %v523 = vadd.f32 %v521, %v522
    %v524 = vrot.slane %v523, 2
    %v525 = vadd.f32 %v523, %v524
    %v526 = vrot.slane %v525, 1
    %v527 = vadd.f32 %v525, %v526
    %v528 = vmul.f32 %v527, 0.00390625
    %v529 = vmul.f32 %v402, %v481
    %v530 = vsel %vm428, %v529, 0.0
    %531 = vadd.xlane.f32.xlu0 %v530
    %v532 = vpop.xlane.xlu0 %531
    %v533 = vrot.slane %v532, 4
    %v534 = vadd.f32 %v532, %v533
    %v535 = vrot.slane %v534, 2
    %v536 = vadd.f32 %v534, %v535
    %v537 = vrot.slane %v536, 1
    %v538 = vadd.f32 %v536, %v537
    %v539 = vmul.f32 %v538, 0.00390625
    %v540 = vmul.f32 %v403, %v481
    %v541 = vsel %vm428, %v540, 0.0
    %542 = vadd.xlane.f32.xlu0 %v541
    %v543 = vpop.xlane.xlu0 %542
    %v544 = vrot.slane %v543, 4
    %v545 = vadd.f32 %v543, %v544
    %v546 = vrot.slane %v545, 2
    %v547 = vadd.f32 %v545, %v546
    %v548 = vrot.slane %v547, 1
    %v549 = vadd.f32 %v547, %v548
    %v550 = vmul.f32 %v549, 0.00390625
    %v551 = vmul.f32 %v539, %v539
    %v552 = vmul.f32 %v550, %v550
    %v553 = vadd.f32 %v551, %v552
    %v554 = vrsqrt.pop %v553
    %v555 = vmul.f32 %v553, %v554
    %vm556 = vcmp.eq.f32.partialorder %v553, inf
    %v557 = vsel %vm556, %v553, %v555
    %vm558 = vcmp.eq.f32.partialorder %v553, 0.0
    %v559 = vand.u32 %v553, 2147483648
    %v560 = vsel %vm558, %v559, %v557
    %v561 = vsel %vm428, %v495, 0.0
    %562 = vadd.xlane.f32.xlu0 %v561
    %v563 = vpop.xlane.xlu0 %562
    %v564 = vrot.slane %v563, 4
    %v565 = vadd.f32 %v563, %v564
    %v566 = vrot.slane %v565, 2
    %v567 = vadd.f32 %v565, %v566
    %v568 = vrot.slane %v567, 1
    %v569 = vadd.f32 %v567, %v568
    %v570 = vmul.f32 %v569, 0.00390625
    %v571 = vmul.f32 %v495, %v495
    %v572 = vsel %vm428, %v571, 0.0
    %573 = vadd.xlane.f32.xlu0 %v572
    %v574 = vpop.xlane.xlu0 %573
    %v575 = vrot.slane %v574, 4
    %v576 = vadd.f32 %v574, %v575
    %v577 = vrot.slane %v576, 2
    %v578 = vadd.f32 %v576, %v577
    %v579 = vrot.slane %v578, 1
    %v580 = vadd.f32 %v578, %v579
    %v581 = vmul.f32 %v570, 256.0
    %v582 = vmul.f32 %v581, %v570
    %v583 = vsub.f32 %v580, %v582
    %v584 = vmul.f32 %v583, 0.003921569
    %v585 = vmax.f32 %v584, 0.0
    %v586 = vrsqrt.pop %v585
    %v587 = vmul.f32 %v585, %v586
    %vm588 = vcmp.eq.f32.partialorder %v585, inf
    %v589 = vsel %vm588, %v585, %v587
    %vm590 = vcmp.eq.f32.partialorder %v585, 0.0
    %v591 = vand.u32 %v585, 2147483648
    %v592 = vsel %vm590, %v591, %v589
    %vm593 = vcmp.gt.f32.partialorder %v481, 0.5
    %v594 = vadd.f32 %v570, %v592
    %vm595 = vcmp.lt.f32.partialorder %v495, %v594
    %vm596 = vmand %vm593, %vm595
    %v597 = vsel %vm596, 1, 0
    %v598 = vcvt.s32.f32 %v597
    %v599 = vsel %vm428, %v598, 0.0
    %600 = vadd.xlane.f32.xlu0 %v599
    %v601 = vpop.xlane.xlu0 %600
    %v602 = vrot.slane %v601, 4
    %v603 = vadd.f32 %v601, %v602
    %v604 = vrot.slane %v603, 2
    %v605 = vadd.f32 %v603, %v604
    %v606 = vrot.slane %v605, 1
    %v607 = vadd.f32 %v605, %v606
    %v608 = vmax.f32 %v607, 1.0
    %v609 = vrcp.pop %v608
    %v610 = vmul.f32 1.0, %v609
    %v611 = vmul.f32 %v598, %v384
    %v612 = vsel %vm428, %v611, 0.0
    %613 = vadd.xlane.f32.xlu0 %v612
    %v614 = vpop.xlane.xlu0 %613
    %v615 = vrot.slane %v614, 4
    %v616 = vadd.f32 %v614, %v615
    %v617 = vrot.slane %v616, 2
    %v618 = vadd.f32 %v616, %v617
    %v619 = vrot.slane %v618, 1
    %v620 = vadd.f32 %v618, %v619
    %v621 = vmul.f32 %v620, %v610
    %v622 = vmul.f32 %v598, %v386
    %v623 = vsel %vm428, %v622, 0.0
    %624 = vadd.xlane.f32.xlu0 %v623
    %v625 = vpop.xlane.xlu0 %624
    %v626 = vrot.slane %v625, 4
    %v627 = vadd.f32 %v625, %v626
    %v628 = vrot.slane %v627, 2
    %v629 = vadd.f32 %v627, %v628
    %v630 = vrot.slane %v629, 1
    %v631 = vadd.f32 %v629, %v630
    %v632 = vmul.f32 %v631, %v610
    %v633 = vmul.f32 %v598, %v367
    %v634 = vsel %vm428, %v633, 0.0
    %635 = vadd.xlane.f32.xlu0 %v634
    %v636 = vpop.xlane.xlu0 %635
    %v637 = vrot.slane %v636, 4
    %v638 = vadd.f32 %v636, %v637
    %v639 = vrot.slane %v638, 2
    %v640 = vadd.f32 %v638, %v639
    %v641 = vrot.slane %v640, 1
    %v642 = vadd.f32 %v640, %v641
    %v643 = vmul.f32 %v642, %v610
    %v644 = vmul.f32 %v598, %v375
    %v645 = vsel %vm428, %v644, 0.0
    %646 = vadd.xlane.f32.xlu0 %v645
    %v647 = vpop.xlane.xlu0 %646
    %v648 = vrot.slane %v647, 4
    %v649 = vadd.f32 %v647, %v648
    %v650 = vrot.slane %v649, 2
    %v651 = vadd.f32 %v649, %v650
    %v652 = vrot.slane %v651, 1
    %v653 = vadd.f32 %v651, %v652
    %v654 = vmul.f32 %v653, %v610
    %v655 = vsub.f32 %v384, %v621
    %v656 = vsub.f32 %v386, %v632
    %v657 = vsub.f32 %v367, %v643
    %v658 = vsub.f32 %v375, %v654
    %v659 = vmul.f32 %v598, %v655
    %v660 = vmul.f32 %v598, %v656
    %v661 = vmul.f32 %v659, %v655
    %v662 = vsel %vm428, %v661, 0.0
    %663 = vadd.xlane.f32.xlu0 %v662
    %v664 = vpop.xlane.xlu0 %663
    %v665 = vrot.slane %v664, 4
    %v666 = vadd.f32 %v664, %v665
    %v667 = vrot.slane %v666, 2
    %v668 = vadd.f32 %v666, %v667
    %v669 = vrot.slane %v668, 1
    %v670 = vadd.f32 %v668, %v669
    %v671 = vmul.f32 %v659, %v656
    %v672 = vsel %vm428, %v671, 0.0
    %673 = vadd.xlane.f32.xlu0 %v672
    %v674 = vpop.xlane.xlu0 %673
    %v675 = vrot.slane %v674, 4
    %v676 = vadd.f32 %v674, %v675
    %v677 = vrot.slane %v676, 2
    %v678 = vadd.f32 %v676, %v677
    %v679 = vrot.slane %v678, 1
    %v680 = vadd.f32 %v678, %v679
    %v681 = vmul.f32 %v660, %v656
    %v682 = vsel %vm428, %v681, 0.0
    %683 = vadd.xlane.f32.xlu0 %v682
    %v684 = vpop.xlane.xlu0 %683
    %v685 = vrot.slane %v684, 4
    %v686 = vadd.f32 %v684, %v685
    %v687 = vrot.slane %v686, 2
    %v688 = vadd.f32 %v686, %v687
    %v689 = vrot.slane %v688, 1
    %v690 = vadd.f32 %v688, %v689
    %v691 = vmul.f32 %v659, %v657
    %v692 = vsel %vm428, %v691, 0.0
    %693 = vadd.xlane.f32.xlu0 %v692
    %v694 = vpop.xlane.xlu0 %693
    %v695 = vrot.slane %v694, 4
    %v696 = vadd.f32 %v694, %v695
    %v697 = vrot.slane %v696, 2
    %v698 = vadd.f32 %v696, %v697
    %v699 = vrot.slane %v698, 1
    %v700 = vadd.f32 %v698, %v699
    %v701 = vmul.f32 %v659, %v658
    %v702 = vsel %vm428, %v701, 0.0
    %703 = vadd.xlane.f32.xlu0 %v702
    %v704 = vpop.xlane.xlu0 %703
    %v705 = vrot.slane %v704, 4
    %v706 = vadd.f32 %v704, %v705
    %v707 = vrot.slane %v706, 2
    %v708 = vadd.f32 %v706, %v707
    %v709 = vrot.slane %v708, 1
    %v710 = vadd.f32 %v708, %v709
    %v711 = vmul.f32 %v660, %v657
    %v712 = vsel %vm428, %v711, 0.0
    %713 = vadd.xlane.f32.xlu0 %v712
    %v714 = vpop.xlane.xlu0 %713
    %v715 = vrot.slane %v714, 4
    %v716 = vadd.f32 %v714, %v715
    %v717 = vrot.slane %v716, 2
    %v718 = vadd.f32 %v716, %v717
    %v719 = vrot.slane %v718, 1
    %v720 = vadd.f32 %v718, %v719
    %v721 = vmul.f32 %v660, %v658
    %v722 = vsel %vm428, %v721, 0.0
    %723 = vadd.xlane.f32.xlu0 %v722
    %v724 = vpop.xlane.xlu0 %723
    %v725 = vrot.slane %v724, 4
    %v726 = vadd.f32 %v724, %v725
    %v727 = vrot.slane %v726, 2
    %v728 = vadd.f32 %v726, %v727
    %v729 = vrot.slane %v728, 1
    %v730 = vadd.f32 %v728, %v729
    %v731 = vmul.f32 %v670, %v690
    %v732 = vmul.f32 %v680, %v680
    %v733 = vsub.f32 %v731, %v732
    %vm734 = vcmp.gt.f32.partialorder %v733, 0.0
    %v735 = vsel %vm734, %v733, 1.0
    %v736 = vrcp.pop %v735
    %v737 = vmul.f32 1.0, %v736
    %v738 = vmul.f32 %v690, %v700
    %v739 = vmul.f32 %v680, %v720
    %v740 = vsub.f32 %v738, %v739
    %v741 = vmul.f32 %v740, %v737
    %v742 = vmul.f32 %v670, %v720
    %v743 = vmul.f32 %v680, %v700
    %v744 = vsub.f32 %v742, %v743
    %v745 = vmul.f32 %v744, %v737
    %v746 = vmul.f32 %v690, %v710
    %v747 = vmul.f32 %v680, %v730
    %v748 = vsub.f32 %v746, %v747
    %v749 = vmul.f32 %v748, %v737
    %v750 = vmul.f32 %v670, %v730
    %v751 = vmul.f32 %v680, %v710
    %v752 = vsub.f32 %v750, %v751
    %v753 = vmul.f32 %v752, %v737
    %v754 = vmul.f32 %v655, %v741
    %v755 = vmul.f32 %v656, %v745
    %v756 = vadd.f32 %v754, %v755
    %v757 = vadd.f32 %v756, %v643
    %v758 = vmul.f32 %v655, %v749
    %v759 = vmul.f32 %v656, %v753
    %v760 = vadd.f32 %v758, %v759
    %v761 = vadd.f32 %v760, %v654
    %v762 = vsub.f32 %v757, %v384
    %v763 = vmul.f32 %v762, %v762
    %v764 = vsub.f32 %v761, %v386
    %v765 = vmul.f32 %v764, %v764
    %v766 = vadd.f32 %v763, %v765
    %v767 = vrsqrt.pop %v766
    %v768 = vmul.f32 %v766, %v767
    %vm769 = vcmp.eq.f32.partialorder %v766, inf
    %v770 = vsel %vm769, %v766, %v768
    %vm771 = vcmp.eq.f32.partialorder %v766, 0.0
    %v772 = vand.u32 %v766, 2147483648
    %v773 = vsel %vm771, %v772, %v770
    %v774 = vmul.f32 %v598, %v773
    %v775 = vsel %vm428, %v774, 0.0
    %776 = vadd.xlane.f32.xlu0 %v775
    %v777 = vpop.xlane.xlu0 %776
    %v778 = vrot.slane %v777, 4
    %v779 = vadd.f32 %v777, %v778
    %v780 = vrot.slane %v779, 2
    %v781 = vadd.f32 %v779, %v780
    %v782 = vrot.slane %v781, 1
    %v783 = vadd.f32 %v781, %v782
    %v784 = vmul.f32 %v783, %v610
    %v785 = vmul.f32 %v517, 10.0
    %v786 = vadd.f32 %v506, %v785
    %v787 = vadd.f32 %v786, %v528
    %v788 = vadd.f32 %v787, %v560
    %v789 = vadd.f32 %v788, %v784
    %s790 = vtos %v789
    %s791 = scalar_lea.smem [#allocation5], 0
    %792 = sst [smem:[%s791]] %s790
    %s793 = vtos %v506
    %s794 = scalar_lea.smem [#allocation5], 1
    %795 = sst [smem:[%s794]] %s793
    %s796 = vtos %v517
    %s797 = scalar_lea.smem [#allocation5], 2
    %798 = sst [smem:[%s797]] %s796
    %s799 = vtos %v528
    %s800 = scalar_lea.smem [#allocation5], 3
    %801 = sst [smem:[%s800]] %s799
    %s802 = vtos %v560
    %s803 = scalar_lea.smem [#allocation5], 4
    %804 = sst [smem:[%s803]] %s802
    %s805 = vtos %v784
    %s806 = scalar_lea.smem [#allocation5], 5
    %807 = sst [smem:[%s806]] %s805
    // Predicated region
    $region14: #{criterion_train_grid.1} parent=1 // pred_check
      _
    $region15: #{criterion_train_grid.1} parent=1 // pred_check_branch
      %809 = sbr.rel (0) target = $region17
    $region16: #{criterion_train_grid.1} parent=1 // pred_region
      %s811 = ssub.s32 16, 16
      %812 = vsyncadd [#allocation4], %s811
      %s814 = sshll.u32 %s2, 4
      %s815 = int_to_ptr.vmem [resolvable:$true] %s814
      %817 = dma.smem_to_vmem [#allocation5], 16, %s815, [#allocation4]
    $region17: #{criterion_train_grid.1} parent=1 // pred_fallthru
      _
    // Predicated region
    $region18: #{criterion_train_grid.1} parent=1 // pred_check
      _
    $region19: #{criterion_train_grid.1} parent=1 // pred_check_branch
      %819 = sbr.rel (0) target = $region21
    $region20: #{criterion_train_grid.1} parent=1 // pred_region
      %820 = dma.done [#allocation4], 16
    $region21: #{criterion_train_grid.1} parent=1 // pred_fallthru
      _
    %821 = sfence
    %822 = vsyncpa [#allocation3], 1
    %823 = vsyncpa [#allocation4], 1

</llo_original>
